<compile_context>
chip_gen: v7x
topology: tpu7x:2x2x1
jax: 0.10.0
libtpu: 0.0.40
codegen_flags: <defaults>
</compile_context>

<pallas_src>
import jax
import jax.numpy as jnp
from jax.experimental import pallas as pl
from jax.experimental.pallas import tpu as pltpu


def attention_kernel(enc_ref, d_ref, mask_ref,
                     wdim_ref, bdim_ref,
                     wenc_ref, benc_ref,
                     wsc_ref, bsc_ref,
                     ctx_ref, score_ref):
    _, BB, S = mask_ref.shape          # batch block, (padded) sequence length
    H = bdim_ref.shape[1]              # (padded) hidden size

    enc = enc_ref[0]                   # (BB*S, 2H) bf16, lane-dense MXU rows
    d = d_ref[0]                       # (BB, H)   f32 (dec MLP, precomputed)
    mask = mask_ref[0]                 # (BB, S)   f32

    # enc_dim_changer: one (BB*S, 2H) @ (2H, H) bf16 MXU matmul, f32 accumulate.
    e = jnp.dot(enc, wdim_ref[...],
                preferred_element_type=jnp.float32) + bdim_ref[...]          # (BB*S, H)

    # enc_wts(relu(e)): (BB*S, H) @ (H, H), bf16 operands, f32 accumulate.
    se = jnp.dot(jnp.maximum(e, 0.0).astype(jnp.bfloat16), wenc_ref[...],
                 preferred_element_type=jnp.float32) + benc_ref[...]         # (BB*S, H)

    # Single layout-preserving reshape of e (S, H are multiples of 8/128);
    # reused for both nothing-else and the context reduction below.
    e3d = e.reshape(BB, S, H)                                                # (BB, S, H)

    # tanh(enc term + dec term broadcast over the sequence axis).
    s3 = jnp.tanh(se.reshape(BB, S, H) + d[:, None, :])                      # (BB, S, H)

    # score_wts (H -> 1): VPU multiply + XLU lane reduction; scalar bias from SMEM.
    sc = jnp.sum(s3 * wsc_ref[...][None, :, :], axis=-1) + bsc_ref[0]        # (BB, S)

    # Masked softmax over the (lane-dense) sequence axis.
    # NOTE: like the PyTorch module, an all-zero mask row yields NaN.
    sc = jnp.where(mask == 0.0, -jnp.inf, sc)
    m = jnp.max(sc, axis=-1, keepdims=True)
    ex = jnp.exp(sc - m)
    p = ex * pl.reciprocal(jnp.sum(ex, axis=-1, keepdims=True), approx=True)  # (BB, S)

    # context[b, h] = sum_s p[b, s] * e[b, s, h] as a batched MXU dot
    # (rides a unit with slack; avoids materializing a (BB, S, H) f32 temp).
    ctx = jnp.einsum('bqs,bsh->bqh', p[:, None, :], e3d,
                     preferred_element_type=jnp.float32)                      # (BB, 1, H)

    ctx_ref[0] = ctx[:, 0, :]                                                 # (BB, H)
    score_ref[0] = p                                                          # (BB, S)


def _round_up(x, m):
    return ((x + m - 1) // m) * m


def _choose_batch_block(B, S_pad, HF_pad, H_pad):
    """Rows per grid step target ~512 (tile-sweep sweet spot), capped so the
    per-step VMEM footprint stays inside the v7x scoped budget, and capped at
    ceil(B/2) so the grid has >= 2 steps (v7x megacore) whenever B >= 2.
    Never falls back to BB = B; ragged B is padded by the wrapper instead."""
    target_rows = 512
    bb = max(1, target_rows // S_pad)
    bb = min(bb, B)
    if B >= 2:
        bb = min(bb, (B + 1) // 2)

    budget = 40 * 1024 * 1024   # conservative for v7x (64 MiB total VMEM)

    def step_bytes(n):
        rows = n * S_pad
        # double-buffered bf16 enc block + f32 intermediates (e, relu, se, s3, ...)
        return 2 * rows * HF_pad * 2 + 6 * rows * H_pad * 4

    while bb > 1 and step_bytes(bb) > budget:
        bb -= 1
    return bb


@jax.jit
def attention_forward(enc_output, dec_hidden, mask, params):
    B, S, HF = enc_output.shape
    H = HF // 2
    f32, bf16 = jnp.float32, jnp.bfloat16

    # Lane-dense padding: outputs (score last dim S, ctx last dim H) become
    # multiples of 128, and reshapes stay layout-preserving.
    S_pad = _round_up(S, 128)
    H_pad = _round_up(H, 128)
    HF_pad = _round_up(HF, 128)

    BB = _choose_batch_block(B, S_pad, HF_pad, H_pad)
    B_pad = _round_up(B, BB)
    G = B_pad // BB

    # dec_wts MLP hoisted to plain JAX: only (B, H) of work, independent of the
    # encoder; keeps wdec1/wdec2 out of resident VMEM entirely.
    d = jnp.maximum(dec_hidden @ params["wdec1"] + params["bdec1"], 0.0) \
        @ params["wdec2"] + params["bdec2"]                                   # (B, H) f32

    # Zero-pad inputs (exact: padded lanes are 0, padded mask positions drop out).
    enc_p = jnp.pad(enc_output.astype(bf16),
                    ((0, B_pad - B), (0, S_pad - S), (0, HF_pad - HF)))
    enc_p = enc_p.reshape(G, BB * S_pad, HF_pad)                              # bf16 stream

    d_p = jnp.pad(d, ((0, B_pad - B), (0, H_pad - H))).reshape(G, BB, H_pad)

    mask_p = jnp.zeros((B_pad, S_pad), f32)
    mask_p = mask_p.at[:B, :S].set(mask.astype(f32))
    mask_p = mask_p.at[B:, :].set(1.0)        # padded batch rows: keep-all (no NaNs)
    mask_p = mask_p.reshape(G, BB, S_pad)

    # Resident weights: bf16 for the MXU operands, f32 biases / score row.
    wdim = jnp.pad(params["wdim"], ((0, HF_pad - HF), (0, H_pad - H))).astype(bf16)
    bdim = jnp.pad(params["bdim"], ((0, 0), (0, H_pad - H)))
    wenc = jnp.pad(params["wenc"], ((0, H_pad - H), (0, H_pad - H))).astype(bf16)
    benc = jnp.pad(params["benc"], ((0, 0), (0, H_pad - H)))
    wsc = jnp.pad(params["wsc"].reshape(1, H), ((0, 0), (0, H_pad - H)))
    bsc = params["bsc"].reshape(1)            # scalar, lives in SMEM

    # Explicit VMEM budget with headroom (v5e scoped default is only 16 MiB).
    enc_blk = BB * S_pad * HF_pad * 2
    io_blk = BB * (H_pad + S_pad) * 4 * 2
    wts = (HF_pad * H_pad + H_pad * H_pad) * 2 + 3 * H_pad * 4
    interm = 6 * BB * S_pad * H_pad * 4
    est = 2 * (enc_blk + io_blk + wts) + interm
    vmem_limit = int(min(max(2 * est, 32 * 1024 * 1024), 64 * 1024 * 1024))

    full2 = lambda b: (0, 0)
    batched = lambda b: (b, 0, 0)

    # NOTE: the weight index_maps are constant, so they are DMA'd only once;
    # pipeline_mode=pl.Buffered(1) would additionally drop their second VMEM
    # buffer (worth it on v7x at very large H).
    ctx_p, score_p = pl.pallas_call(
        attention_kernel,
        out_shape=(jax.ShapeDtypeStruct((G, BB, H_pad), f32),
                   jax.ShapeDtypeStruct((G, BB, S_pad), f32)),
        grid_spec=pltpu.PrefetchScalarGridSpec(
            num_scalar_prefetch=0,
            grid=(G,),
            in_specs=[
                pl.BlockSpec((1, BB * S_pad, HF_pad), batched),   # enc rows (bf16)
                pl.BlockSpec((1, BB, H_pad), batched),            # dec MLP result
                pl.BlockSpec((1, BB, S_pad), batched),            # mask
                pl.BlockSpec((HF_pad, H_pad), full2),             # wdim (bf16)
                pl.BlockSpec((1, H_pad), full2),                  # bdim
                pl.BlockSpec((H_pad, H_pad), full2),              # wenc (bf16)
                pl.BlockSpec((1, H_pad), full2),                  # benc
                pl.BlockSpec((1, H_pad), full2),                  # wsc row
                pl.BlockSpec(memory_space=pltpu.MemorySpace.SMEM),  # bsc scalar
            ],
            out_specs=[
                pl.BlockSpec((1, BB, H_pad), batched),            # context
                pl.BlockSpec((1, BB, S_pad), batched),            # score (lane-dense)
            ],
        ),
        compiler_params=pltpu.CompilerParams(
            dimension_semantics=("parallel",),
            vmem_limit_bytes=vmem_limit),
    )(enc_p, d_p, mask_p, wdim, bdim, wenc, benc, wsc, bsc)

    ctx = ctx_p.reshape(B_pad, H_pad)[:B, :H]
    score = score_p.reshape(B_pad, S_pad)[:B, :S]
    # PyTorch module returns score with a trailing singleton dim.
    return ctx, score.reshape(B, S, 1)


def reference_forward(enc_output, dec_hidden, mask, p):
    """Pure-JAX reference. Emulates the kernel's bf16 MXU operands so the
    comparison isolates kernel correctness from the (intentional) bf16 choice."""
    bf = lambda x: x.astype(jnp.bfloat16).astype(jnp.float32)
    e = bf(enc_output) @ bf(p["wdim"]) + p["bdim"]
    d = jnp.maximum(dec_hidden @ p["wdec1"] + p["bdec1"], 0.0) @ p["wdec2"] + p["bdec2"]
    s = jnp.tanh(bf(jnp.maximum(e, 0.0)) @ bf(p["wenc"]) + p["benc"] + d[:, None, :])
    sc = s @ p["wsc"] + p["bsc"]
    sc = jnp.where(mask[:, :, None] == 0, -jnp.inf, sc)
    sc = jax.nn.softmax(sc, axis=1)
    ctx = jnp.einsum("bsh,bso->bh", e, sc)
    return ctx, sc


def init_params(key, hidden):
    ks = jax.random.split(key, 12)

    def lin(kw, kb, fan_in, fan_out):
        lim = 1.0 / jnp.sqrt(fan_in)
        w = jax.random.uniform(kw, (fan_in, fan_out), jnp.float32, -lim, lim)
        b = jax.random.uniform(kb, (1, fan_out), jnp.float32, -lim, lim)
        return w, b

    wdim, bdim = lin(ks[0], ks[1], 2 * hidden, hidden)
    wenc, benc = lin(ks[2], ks[3], hidden, hidden)
    wdec1, bdec1 = lin(ks[4], ks[5], hidden, hidden)
    wdec2, bdec2 = lin(ks[6], ks[7], hidden, hidden)
    wsc, bsc = lin(ks[8], ks[9], hidden, 1)
    return dict(wdim=wdim, bdim=bdim, wenc=wenc, benc=benc,
                wdec1=wdec1, bdec1=bdec1, wdec2=wdec2, bdec2=bdec2,
                wsc=wsc, bsc=bsc)


if __name__ == "__main__":
    B, S, H = 2, 8, 32
    key = jax.random.PRNGKey(0)
    k_enc, k_dec, k_par = jax.random.split(key, 3)

    enc_output = jax.random.normal(k_enc, (B, S, 2 * H), jnp.float32)
    dec_hidden = jax.random.normal(k_dec, (B, H), jnp.float32)
    # mask: 1 = keep, 0 = masked; every row keeps at least one valid position.
    mask = jnp.array([[1, 1, 1, 1, 1, 0, 0, 0],
                      [1, 1, 1, 0, 1, 1, 0, 1]], dtype=jnp.float32)

    params = init_params(k_par, H)

    ctx, score = attention_forward(enc_output, dec_hidden, mask, params)
    jax.block_until_ready((ctx, score))

    ref_ctx, ref_score = reference_forward(enc_output, dec_hidden, mask, params)
    # Tolerance covers the EUP approximate reciprocal and MXU vs XLA default
    # matmul precision on the f32 context reduction.
    assert jnp.allclose(ctx, ref_ctx, atol=1e-2, rtol=1e-2), "ctx mismatch"
    assert jnp.allclose(score, ref_score, atol=1e-2, rtol=1e-2), "score mismatch"

    print("KERNEL_OK")
</pallas_src>

<mosaic_0001>
module attributes {stable_mosaic.version = 11 : i64} {
  func.func @attention_kernel(%arg0: i32, %arg1: memref<1x128x128xbf16, #tpu.memory_space<vmem>>, %arg2: memref<1x1x128xf32, #tpu.memory_space<vmem>>, %arg3: memref<1x1x128xf32, #tpu.memory_space<vmem>>, %arg4: memref<128x128xbf16, #tpu.memory_space<vmem>>, %arg5: memref<1x128xf32, #tpu.memory_space<vmem>>, %arg6: memref<128x128xbf16, #tpu.memory_space<vmem>>, %arg7: memref<1x128xf32, #tpu.memory_space<vmem>>, %arg8: memref<1x128xf32, #tpu.memory_space<vmem>>, %arg9: memref<1xf32, #tpu.memory_space<smem>>, %arg10: memref<1x1x128xf32, #tpu.memory_space<vmem>>, %arg11: memref<1x1x128xf32, #tpu.memory_space<vmem>>) attributes {dimension_semantics = [#tpu.dimension_semantics<parallel>], iteration_bounds = array<i64: 2>, scalar_prefetch = 0 : i64, scratch_operands = 0 : i64, tpu.core_type = #tpu.core_type<tc>, window_params = [{transform_indices = @transform_0, window_bounds = array<i64: 1, 128, 128>}, {transform_indices = @transform_1, window_bounds = array<i64: 1, 1, 128>}, {transform_indices = @transform_2, window_bounds = array<i64: 1, 1, 128>}, {pipeline_mode = #tpu.pipeline_mode<synchronous>, transform_indices = @transform_3, window_bounds = array<i64: 128, 128>}, {pipeline_mode = #tpu.pipeline_mode<synchronous>, transform_indices = @transform_4, window_bounds = array<i64: 1, 128>}, {pipeline_mode = #tpu.pipeline_mode<synchronous>, transform_indices = @transform_5, window_bounds = array<i64: 128, 128>}, {pipeline_mode = #tpu.pipeline_mode<synchronous>, transform_indices = @transform_6, window_bounds = array<i64: 1, 128>}, {pipeline_mode = #tpu.pipeline_mode<synchronous>, transform_indices = @transform_7, window_bounds = array<i64: 1, 128>}, {transform_indices = @transform_8, window_bounds = array<i64: 1>}, {transform_indices = @transform_9, window_bounds = array<i64: 1, 1, 128>}, {transform_indices = @transform_10, window_bounds = array<i64: 1, 1, 128>}]} {
    %c0 = arith.constant 0 : index
    %c0_0 = arith.constant 0 : index
    %c0_1 = arith.constant 0 : index
    %0 = vector.load %arg1[%c0, %c0_0, %c0_1] : memref<1x128x128xbf16, #tpu.memory_space<vmem>>, vector<1x128x128xbf16>
    %1 = vector.shape_cast %0 : vector<1x128x128xbf16> to vector<128x128xbf16>
    %c0_2 = arith.constant 0 : index
    %c0_3 = arith.constant 0 : index
    %c0_4 = arith.constant 0 : index
    %2 = vector.load %arg2[%c0_2, %c0_3, %c0_4] : memref<1x1x128xf32, #tpu.memory_space<vmem>>, vector<1x1x128xf32>
    %3 = vector.shape_cast %2 : vector<1x1x128xf32> to vector<1x128xf32>
    %c0_5 = arith.constant 0 : index
    %c0_6 = arith.constant 0 : index
    %c0_7 = arith.constant 0 : index
    %4 = vector.load %arg3[%c0_5, %c0_6, %c0_7] : memref<1x1x128xf32, #tpu.memory_space<vmem>>, vector<1x1x128xf32>
    %5 = vector.shape_cast %4 : vector<1x1x128xf32> to vector<1x128xf32>
    %c0_8 = arith.constant 0 : index
    %c0_9 = arith.constant 0 : index
    %6 = vector.load %arg4[%c0_8, %c0_9] : memref<128x128xbf16, #tpu.memory_space<vmem>>, vector<128x128xbf16>
    %cst = arith.constant dense<0.000000e+00> : vector<128x128xf32>
    %7 = tpu.matmul %1, %6, %cst {dimension_numbers = #tpu.dot_dimension_numbers<[1], [0], [0], [1], [0, 0, 1, 1], [], []>} : vector<128x128xbf16>, vector<128x128xbf16>, vector<128x128xf32> -> vector<128x128xf32>
    %c0_10 = arith.constant 0 : index
    %c0_11 = arith.constant 0 : index
    %8 = vector.load %arg5[%c0_10, %c0_11] : memref<1x128xf32, #tpu.memory_space<vmem>>, vector<1x128xf32>
    %9 = vector.broadcast %8 : vector<1x128xf32> to vector<128x128xf32>
    %10 = arith.addf %7, %9 : vector<128x128xf32>
    %cst_12 = arith.constant 0.000000e+00 : f32
    %11 = vector.broadcast %cst_12 : f32 to vector<128x128xf32>
    %12 = arith.maximumf %10, %11 : vector<128x128xf32>
    %13 = arith.truncf %12 : vector<128x128xf32> to vector<128x128xbf16>
    %c0_13 = arith.constant 0 : index
    %c0_14 = arith.constant 0 : index
    %14 = vector.load %arg6[%c0_13, %c0_14] : memref<128x128xbf16, #tpu.memory_space<vmem>>, vector<128x128xbf16>
    %cst_15 = arith.constant dense<0.000000e+00> : vector<128x128xf32>
    %15 = tpu.matmul %13, %14, %cst_15 {dimension_numbers = #tpu.dot_dimension_numbers<[1], [0], [0], [1], [0, 0, 1, 1], [], []>} : vector<128x128xbf16>, vector<128x128xbf16>, vector<128x128xf32> -> vector<128x128xf32>
    %c0_16 = arith.constant 0 : index
    %c0_17 = arith.constant 0 : index
    %16 = vector.load %arg7[%c0_16, %c0_17] : memref<1x128xf32, #tpu.memory_space<vmem>>, vector<1x128xf32>
    %17 = vector.broadcast %16 : vector<1x128xf32> to vector<128x128xf32>
    %18 = arith.addf %15, %17 : vector<128x128xf32>
    %19 = vector.shape_cast %10 : vector<128x128xf32> to vector<1x128x128xf32>
    %20 = vector.shape_cast %18 : vector<128x128xf32> to vector<1x128x128xf32>
    %21 = vector.shape_cast %3 : vector<1x128xf32> to vector<1x1x128xf32>
    %22 = vector.broadcast %21 : vector<1x1x128xf32> to vector<1x128x128xf32>
    %23 = arith.addf %20, %22 : vector<1x128x128xf32>
    %24 = math.tanh %23 : vector<1x128x128xf32>
    %c0_18 = arith.constant 0 : index
    %c0_19 = arith.constant 0 : index
    %25 = vector.load %arg8[%c0_18, %c0_19] : memref<1x128xf32, #tpu.memory_space<vmem>>, vector<1x128xf32>
    %26 = vector.shape_cast %25 : vector<1x128xf32> to vector<1x1x128xf32>
    %27 = vector.broadcast %26 : vector<1x1x128xf32> to vector<1x128x128xf32>
    %28 = arith.mulf %24, %27 : vector<1x128x128xf32>
    %cst_20 = arith.constant dense<0.000000e+00> : vector<1x128xf32>
    %29 = vector.multi_reduction <add>, %28, %cst_20 [2] : vector<1x128x128xf32> to vector<1x128xf32>
    %c0_21 = arith.constant 0 : index
    %30 = memref.load %arg9[%c0_21] : memref<1xf32, #tpu.memory_space<smem>>
    %31 = vector.broadcast %30 : f32 to vector<1x128xf32>
    %32 = arith.addf %29, %31 : vector<1x128xf32>
    %cst_22 = arith.constant 0.000000e+00 : f32
    %33 = vector.broadcast %cst_22 : f32 to vector<1x128xf32>
    %34 = arith.cmpf oeq, %5, %33 : vector<1x128xf32>
    %cst_23 = arith.constant 0xFF800000 : f32
    %35 = vector.broadcast %cst_23 : f32 to vector<1x128xf32>
    %36 = arith.select %34, %35, %32 : vector<1x128xi1>, vector<1x128xf32>
    %cst_24 = arith.constant dense<0xFF800000> : vector<1xf32>
    %37 = vector.multi_reduction <maximumf>, %36, %cst_24 [1] : vector<1x128xf32> to vector<1xf32>
    %38 = vector.shape_cast %37 : vector<1xf32> to vector<1x1xf32>
    %39 = vector.broadcast %38 : vector<1x1xf32> to vector<1x128xf32>
    %40 = arith.subf %36, %39 : vector<1x128xf32>
    %41 = math.exp %40 : vector<1x128xf32>
    %cst_25 = arith.constant dense<0.000000e+00> : vector<1xf32>
    %42 = vector.multi_reduction <add>, %41, %cst_25 [1] : vector<1x128xf32> to vector<1xf32>
    %43 = vector.shape_cast %42 : vector<1xf32> to vector<1x1xf32>
    %44 = tpu.reciprocal %43 {approx = true} : vector<1x1xf32> -> vector<1x1xf32>
    %45 = vector.broadcast %44 : vector<1x1xf32> to vector<1x128xf32>
    %46 = arith.mulf %41, %45 : vector<1x128xf32>
    %47 = vector.shape_cast %46 : vector<1x128xf32> to vector<1x1x128xf32>
    "tpu.trace_start"() <{level = 10 : i32, message = "bqs,bsh->bqh"}> : () -> ()
    %cst_26 = arith.constant dense<0.000000e+00> : vector<1x1x128xf32>
    %48 = tpu.matmul %47, %19, %cst_26 {dimension_numbers = #tpu.dot_dimension_numbers<[2], [1], [1], [2], [0, 0, 0, 1, 1, 2], [0], [0]>} : vector<1x1x128xf32>, vector<1x128x128xf32>, vector<1x1x128xf32> -> vector<1x1x128xf32>
    "tpu.trace_stop"() : () -> ()
    %49 = vector.shape_cast %48 : vector<1x1x128xf32> to vector<1x128xf32>
    %c0_27 = arith.constant 0 : index
    %c0_28 = arith.constant 0 : index
    %c0_29 = arith.constant 0 : index
    %50 = vector.load %arg10[%c0_27, %c0_28, %c0_29] : memref<1x1x128xf32, #tpu.memory_space<vmem>>, vector<1x1x128xf32>
    %51 = vector.shape_cast %50 : vector<1x1x128xf32> to vector<1x128xf32>
    %52 = vector.shape_cast %49 : vector<1x128xf32> to vector<1x1x128xf32>
    tpu.vector_store %arg10[%c0_27, %c0_28, %c0_29], %52 {strides = array<i32>} : memref<1x1x128xf32, #tpu.memory_space<vmem>>, vector<1x1x128xf32>,
    %c0_30 = arith.constant 0 : index
    %c0_31 = arith.constant 0 : index
    %c0_32 = arith.constant 0 : index
    %53 = vector.load %arg11[%c0_30, %c0_31, %c0_32] : memref<1x1x128xf32, #tpu.memory_space<vmem>>, vector<1x1x128xf32>
    %54 = vector.shape_cast %53 : vector<1x1x128xf32> to vector<1x128xf32>
    %55 = vector.shape_cast %46 : vector<1x128xf32> to vector<1x1x128xf32>
    tpu.vector_store %arg11[%c0_30, %c0_31, %c0_32], %55 {strides = array<i32>} : memref<1x1x128xf32, #tpu.memory_space<vmem>>, vector<1x1x128xf32>,
    return
  }
  func.func @transform_0(%arg0: i32) -> (i32, i32, i32) {
    %c0_i32 = arith.constant 0 : i32
    %c0_i32_0 = arith.constant 0 : i32
    %c0_i32_1 = arith.constant 0 : i32
    return %arg0, %c0_i32, %c0_i32_0 : i32, i32, i32
  }
  func.func @transform_1(%arg0: i32) -> (i32, i32, i32) {
    %c0_i32 = arith.constant 0 : i32
    %c0_i32_0 = arith.constant 0 : i32
    %c0_i32_1 = arith.constant 0 : i32
    return %arg0, %c0_i32, %c0_i32_0 : i32, i32, i32
  }
  func.func @transform_2(%arg0: i32) -> (i32, i32, i32) {
    %c0_i32 = arith.constant 0 : i32
    %c0_i32_0 = arith.constant 0 : i32
    %c0_i32_1 = arith.constant 0 : i32
    return %arg0, %c0_i32, %c0_i32_0 : i32, i32, i32
  }
  func.func @transform_3(%arg0: i32) -> (i32, i32) {
    %c0_i32 = arith.constant 0 : i32
    %c0_i32_0 = arith.constant 0 : i32
    %c0_i32_1 = arith.constant 0 : i32
    return %c0_i32, %c0_i32_0 : i32, i32
  }
  func.func @transform_4(%arg0: i32) -> (i32, i32) {
    %c0_i32 = arith.constant 0 : i32
    %c0_i32_0 = arith.constant 0 : i32
    %c0_i32_1 = arith.constant 0 : i32
    return %c0_i32, %c0_i32_0 : i32, i32
  }
  func.func @transform_5(%arg0: i32) -> (i32, i32) {
    %c0_i32 = arith.constant 0 : i32
    %c0_i32_0 = arith.constant 0 : i32
    %c0_i32_1 = arith.constant 0 : i32
    return %c0_i32, %c0_i32_0 : i32, i32
  }
  func.func @transform_6(%arg0: i32) -> (i32, i32) {
    %c0_i32 = arith.constant 0 : i32
    %c0_i32_0 = arith.constant 0 : i32
    %c0_i32_1 = arith.constant 0 : i32
    return %c0_i32, %c0_i32_0 : i32, i32
  }
  func.func @transform_7(%arg0: i32) -> (i32, i32) {
    %c0_i32 = arith.constant 0 : i32
    %c0_i32_0 = arith.constant 0 : i32
    %c0_i32_1 = arith.constant 0 : i32
    return %c0_i32, %c0_i32_0 : i32, i32
  }
  func.func @transform_8(%arg0: i32) -> i32 {
    %c0_i32 = arith.constant 0 : i32
    %c0_i32_0 = arith.constant 0 : i32
    return %c0_i32 : i32
  }
  func.func @transform_9(%arg0: i32) -> (i32, i32, i32) {
    %c0_i32 = arith.constant 0 : i32
    %c0_i32_0 = arith.constant 0 : i32
    %c0_i32_1 = arith.constant 0 : i32
    return %arg0, %c0_i32, %c0_i32_0 : i32, i32, i32
  }
  func.func @transform_10(%arg0: i32) -> (i32, i32, i32) {
    %c0_i32 = arith.constant 0 : i32
    %c0_i32_0 = arith.constant 0 : i32
    %c0_i32_1 = arith.constant 0 : i32
    return %arg0, %c0_i32, %c0_i32_0 : i32, i32, i32
  }
}

</mosaic_0001>

<llo_original>
// kernel: attention_forward.1
$region0: #{attention_forward.1}
  #allocation0 [shape = 'u32[]', space=smem, size = 0x4, offset = 0x4, fixed_abs, tag = 'smem constant byte address 0x4 - core index']
  #allocation1 [shape = 'u32[144,128]{1,0:T(1,128)}', space=vmem, size = 0x12000, scoped, tag = 'internal scratch']
  #allocation2 [shape = 'f32[1]{0:T(128)S(6)}', space=smem, size = 0x200, scoped, tag = 'scoped memory for attention_forward.1']
  %s0 = inlined_call_operand.vmem [shape: bf16[2,128,128], index: 0, kind: input, shape index: {}]
  %s1 = inlined_call_operand.vmem [shape: f32[2,1,128], index: 1, kind: input, shape index: {}]
  %s2 = inlined_call_operand.vmem [shape: f32[2,1,128], index: 2, kind: input, shape index: {}]
  %s3 = inlined_call_operand.vmem [shape: bf16[128,128], index: 3, kind: input, shape index: {}]
  %s4 = inlined_call_operand.vmem [shape: f32[1,128], index: 4, kind: input, shape index: {}]
  %s5 = inlined_call_operand.vmem [shape: bf16[128,128], index: 5, kind: input, shape index: {}]
  %s6 = inlined_call_operand.vmem [shape: f32[1,128], index: 6, kind: input, shape index: {}]
  %s7 = inlined_call_operand.vmem [shape: f32[1,128], index: 7, kind: input, shape index: {}]
  %s8 = inlined_call_operand.<no memory space> [shape: f32[1], index: 8, kind: input, shape index: {}]
  %s9 = inlined_call_operand.hbm [shape: f32[2,1,128], index: 9, kind: output, shape index: {0}]
  %s10 = inlined_call_operand.hbm [shape: f32[2,1,128], index: 10, kind: output, shape index: {1}]
  %11 = xla_tuple %s9, %s10
  %s12 = sld [smem:[#allocation0]]
  $region77: #{attention_forward.1} parent=0
    _
  %s14 = ssub.s32 1, %s12
  %s15 = scalar_select 0, %s14, %s12
  %16 = sst [smem:[#allocation2]] %s8
  $region1: #{attention_forward.1} parent=0
    #allocation3 [shape = 'u8[1024]{0}', space=vmem, size = 0x400, scoped, tag = 'output window, operand 0']
    #allocation4 [shape = 's32[2]{0}', space=sflag, size = 0x8, scoped, tag = 'scoped memory for attention_forward.1']
    #allocation5 [shape = 'u8[1024]{0}', space=vmem, size = 0x400, scoped, tag = 'output window, operand 1']
    #allocation6 [shape = 's32[2]{0}', space=sflag, size = 0x8, scoped, tag = 'scoped memory for attention_forward.1']
    %17 = vsyncpa [#allocation4], 0
    %s18 = scalar_lea.sflag [#allocation4], 1
    %19 = vsyncpa %s18, 0
    %20 = vsyncpa [#allocation6], 0
    %s21 = scalar_lea.sflag [#allocation6], 1
    %22 = vsyncpa %s21, 0
    loop: start=0, step=1, limit=4
    $region2: #{attention_forward.1} parent=1 // loop_pre_header
      _
    $region3: #{attention_forward.1} parent=1 // loop_header
      %s24 = sphi 0, %s28
      %p25 = scmp.ge.s32.totalorder %s24, 4
      %s34 = sphi 0, %s36
      %s37 = sphi 0, %s34
      %s38 = sphi 0, %s37
      %s54 = sphi 0, %s38
      %s60 = sphi 0, %s62
      %s63 = sphi 0, %s60
      %s64 = sphi 0, %s63
      %s80 = sphi 0, %s64
      %s86 = sphi 0, %s88
      %s89 = sphi 0, %s86
      %s90 = sphi 0, %s89
      %s106 = sphi 0, %s90
      %s110 = sphi 0, %s110
      %s112 = sphi 0, %s110
      %s113 = sphi 0, %s112
      %s127 = sphi 0, %s113
      %s131 = sphi 0, %s131
      %s133 = sphi 0, %s131
      %s134 = sphi 0, %s133
      %s148 = sphi 0, %s134
      %s152 = sphi 0, %s152
      %s154 = sphi 0, %s152
      %s155 = sphi 0, %s154
      %s169 = sphi 0, %s155
      %s173 = sphi 0, %s173
      %s175 = sphi 0, %s173
      %s176 = sphi 0, %s175
      %s190 = sphi 0, %s176
      %s194 = sphi 0, %s194
      %s196 = sphi 0, %s194
      %s197 = sphi 0, %s196
      %s211 = sphi 0, %s197
      %s215 = sphi 0, %s215
      %s217 = sphi 0, %s215
      %s218 = sphi 0, %s217
      %s232 = sphi 0, %s218
      %s238 = sphi 0, %s240
      %s241 = sphi 0, %s238
      %s242 = sphi 0, %s241
      %s258 = sphi 0, %s242
      %s264 = sphi 0, %s266
      %s267 = sphi 0, %s264
      %s268 = sphi 0, %s267
      %s284 = sphi 0, %s268
    $region4: #{attention_forward.1} parent=1 // loop_header_branch
      %27 = sbr.rel (%p25) target = $region8
    $region5: #{attention_forward.1} parent=1 // loop_body
      %s29 = ssub.s32 %s24, 1
      %s30 = ssub.s32 %s24, 2
      %s31 = sadd.s32 %s24, 1
      %s32 = ssub.s32 %s24, %s31
      %p33 = scmp.eq.s32.totalorder %s32, 0
      %s35 = sadd.s32 %s34, 1
      %s36 = scalar_select %p33, %s34, %s35
      %p39 = pneg %p33
      %p40 = scmp.eq.s32.totalorder %s24, 1
      %p41 = por %p39, %p40
      %p42 = scmp.ne.s32.totalorder %s34, %s37
      %p43 = scmp.eq.s32.totalorder %s24, 0
      %p44 = por %p42, %p43
      %p45 = scmp.ne.s32.totalorder %s34, %s37
      %p46 = scmp.eq.s32.totalorder %s29, 1
      %p47 = por %p45, %p46
      %p48 = scmp.ne.s32.totalorder %s37, %s38
      %p49 = scmp.eq.s32.totalorder %s29, 0
      %p50 = por %p48, %p49
      %p51 = scmp.ne.s32.totalorder %s37, %s38
      %p52 = scmp.eq.s32.totalorder %s30, 1
      %p53 = por %p51, %p52
      %p55 = scmp.ne.s32.totalorder %s38, %s54
      %p56 = scmp.eq.s32.totalorder %s30, 0
      %p57 = por %p55, %p56
      %s58 = ssub.s32 %s24, %s31
      %p59 = scmp.eq.s32.totalorder %s58, 0
      %s61 = sadd.s32 %s60, 1
      %s62 = scalar_select %p59, %s60, %s61
      %p65 = pneg %p59
      %p66 = scmp.eq.s32.totalorder %s24, 1
      %p67 = por %p65, %p66
      %p68 = scmp.ne.s32.totalorder %s60, %s63
      %p69 = scmp.eq.s32.totalorder %s24, 0
      %p70 = por %p68, %p69
      %p71 = scmp.ne.s32.totalorder %s60, %s63
      %p72 = scmp.eq.s32.totalorder %s29, 1
      %p73 = por %p71, %p72
      %p74 = scmp.ne.s32.totalorder %s63, %s64
      %p75 = scmp.eq.s32.totalorder %s29, 0
      %p76 = por %p74, %p75
      %p77 = scmp.ne.s32.totalorder %s63, %s64
      %p78 = scmp.eq.s32.totalorder %s30, 1
      %p79 = por %p77, %p78
      %p81 = scmp.ne.s32.totalorder %s64, %s80
      %p82 = scmp.eq.s32.totalorder %s30, 0
      %p83 = por %p81, %p82
      %s84 = ssub.s32 %s24, %s31
      %p85 = scmp.eq.s32.totalorder %s84, 0
      %s87 = sadd.s32 %s86, 1
      %s88 = scalar_select %p85, %s86, %s87
      %p91 = pneg %p85
      %p92 = scmp.eq.s32.totalorder %s24, 1
      %p93 = por %p91, %p92
      %p94 = scmp.ne.s32.totalorder %s86, %s89
      %p95 = scmp.eq.s32.totalorder %s24, 0
      %p96 = por %p94, %p95
      %p97 = scmp.ne.s32.totalorder %s86, %s89
      %p98 = scmp.eq.s32.totalorder %s29, 1
      %p99 = por %p97, %p98
      %p100 = scmp.ne.s32.totalorder %s89, %s90
      %p101 = scmp.eq.s32.totalorder %s29, 0
      %p102 = por %p100, %p101
      %p103 = scmp.ne.s32.totalorder %s89, %s90
      %p104 = scmp.eq.s32.totalorder %s30, 1
      %p105 = por %p103, %p104
      %p107 = scmp.ne.s32.totalorder %s90, %s106
      %p108 = scmp.eq.s32.totalorder %s30, 0
      %p109 = por %p107, %p108
      %s111 = sadd.s32 %s110, 1
      %p114 = scmp.eq.s32.totalorder %s24, 1
      %p115 = scmp.ne.s32.totalorder %s110, %s112
      %p116 = scmp.eq.s32.totalorder %s24, 0
      %p117 = por %p115, %p116
      %p118 = scmp.ne.s32.totalorder %s110, %s112
      %p119 = scmp.eq.s32.totalorder %s29, 1
      %p120 = por %p118, %p119
      %p121 = scmp.ne.s32.totalorder %s112, %s113
      %p122 = scmp.eq.s32.totalorder %s29, 0
      %p123 = por %p121, %p122
      %p124 = scmp.ne.s32.totalorder %s112, %s113
      %p125 = scmp.eq.s32.totalorder %s30, 1
      %p126 = por %p124, %p125
      %p128 = scmp.ne.s32.totalorder %s113, %s127
      %p129 = scmp.eq.s32.totalorder %s30, 0
      %p130 = por %p128, %p129
      %s132 = sadd.s32 %s131, 1
      %p135 = scmp.eq.s32.totalorder %s24, 1
      %p136 = scmp.ne.s32.totalorder %s131, %s133
      %p137 = scmp.eq.s32.totalorder %s24, 0
      %p138 = por %p136, %p137
      %p139 = scmp.ne.s32.totalorder %s131, %s133
      %p140 = scmp.eq.s32.totalorder %s29, 1
      %p141 = por %p139, %p140
      %p142 = scmp.ne.s32.totalorder %s133, %s134
      %p143 = scmp.eq.s32.totalorder %s29, 0
      %p144 = por %p142, %p143
      %p145 = scmp.ne.s32.totalorder %s133, %s134
      %p146 = scmp.eq.s32.totalorder %s30, 1
      %p147 = por %p145, %p146
      %p149 = scmp.ne.s32.totalorder %s134, %s148
      %p150 = scmp.eq.s32.totalorder %s30, 0
      %p151 = por %p149, %p150
      %s153 = sadd.s32 %s152, 1
      %p156 = scmp.eq.s32.totalorder %s24, 1
      %p157 = scmp.ne.s32.totalorder %s152, %s154
      %p158 = scmp.eq.s32.totalorder %s24, 0
      %p159 = por %p157, %p158
      %p160 = scmp.ne.s32.totalorder %s152, %s154
      %p161 = scmp.eq.s32.totalorder %s29, 1
      %p162 = por %p160, %p161
      %p163 = scmp.ne.s32.totalorder %s154, %s155
      %p164 = scmp.eq.s32.totalorder %s29, 0
      %p165 = por %p163, %p164
      %p166 = scmp.ne.s32.totalorder %s154, %s155
      %p167 = scmp.eq.s32.totalorder %s30, 1
      %p168 = por %p166, %p167
      %p170 = scmp.ne.s32.totalorder %s155, %s169
      %p171 = scmp.eq.s32.totalorder %s30, 0
      %p172 = por %p170, %p171
      %s174 = sadd.s32 %s173, 1
      %p177 = scmp.eq.s32.totalorder %s24, 1
      %p178 = scmp.ne.s32.totalorder %s173, %s175
      %p179 = scmp.eq.s32.totalorder %s24, 0
      %p180 = por %p178, %p179
      %p181 = scmp.ne.s32.totalorder %s173, %s175
      %p182 = scmp.eq.s32.totalorder %s29, 1
      %p183 = por %p181, %p182
      %p184 = scmp.ne.s32.totalorder %s175, %s176
      %p185 = scmp.eq.s32.totalorder %s29, 0
      %p186 = por %p184, %p185
      %p187 = scmp.ne.s32.totalorder %s175, %s176
      %p188 = scmp.eq.s32.totalorder %s30, 1
      %p189 = por %p187, %p188
      %p191 = scmp.ne.s32.totalorder %s176, %s190
      %p192 = scmp.eq.s32.totalorder %s30, 0
      %p193 = por %p191, %p192
      %s195 = sadd.s32 %s194, 1
      %p198 = scmp.eq.s32.totalorder %s24, 1
      %p199 = scmp.ne.s32.totalorder %s194, %s196
      %p200 = scmp.eq.s32.totalorder %s24, 0
      %p201 = por %p199, %p200
      %p202 = scmp.ne.s32.totalorder %s194, %s196
      %p203 = scmp.eq.s32.totalorder %s29, 1
      %p204 = por %p202, %p203
      %p205 = scmp.ne.s32.totalorder %s196, %s197
      %p206 = scmp.eq.s32.totalorder %s29, 0
      %p207 = por %p205, %p206
      %p208 = scmp.ne.s32.totalorder %s196, %s197
      %p209 = scmp.eq.s32.totalorder %s30, 1
      %p210 = por %p208, %p209
      %p212 = scmp.ne.s32.totalorder %s197, %s211
      %p213 = scmp.eq.s32.totalorder %s30, 0
      %p214 = por %p212, %p213
      %s216 = sadd.s32 %s215, 1
      %p219 = scmp.eq.s32.totalorder %s24, 1
      %p220 = scmp.ne.s32.totalorder %s215, %s217
      %p221 = scmp.eq.s32.totalorder %s24, 0
      %p222 = por %p220, %p221
      %p223 = scmp.ne.s32.totalorder %s215, %s217
      %p224 = scmp.eq.s32.totalorder %s29, 1
      %p225 = por %p223, %p224
      %p226 = scmp.ne.s32.totalorder %s217, %s218
      %p227 = scmp.eq.s32.totalorder %s29, 0
      %p228 = por %p226, %p227
      %p229 = scmp.ne.s32.totalorder %s217, %s218
      %p230 = scmp.eq.s32.totalorder %s30, 1
      %p231 = por %p229, %p230
      %p233 = scmp.ne.s32.totalorder %s218, %s232
      %p234 = scmp.eq.s32.totalorder %s30, 0
      %p235 = por %p233, %p234
      %s236 = ssub.s32 %s24, %s31
      %p237 = scmp.eq.s32.totalorder %s236, 0
      %s239 = sadd.s32 %s238, 1
      %s240 = scalar_select %p237, %s238, %s239
      %p243 = pneg %p237
      %p244 = scmp.eq.s32.totalorder %s24, 1
      %p245 = por %p243, %p244
      %p246 = scmp.ne.s32.totalorder %s238, %s241
      %p247 = scmp.eq.s32.totalorder %s24, 0
      %p248 = por %p246, %p247
      %p249 = scmp.ne.s32.totalorder %s238, %s241
      %p250 = scmp.eq.s32.totalorder %s29, 1
      %p251 = por %p249, %p250
      %p252 = scmp.ne.s32.totalorder %s241, %s242
      %p253 = scmp.eq.s32.totalorder %s29, 0
      %p254 = por %p252, %p253
      %p255 = scmp.ne.s32.totalorder %s241, %s242
      %p256 = scmp.eq.s32.totalorder %s30, 1
      %p257 = por %p255, %p256
      %p259 = scmp.ne.s32.totalorder %s242, %s258
      %p260 = scmp.eq.s32.totalorder %s30, 0
      %p261 = por %p259, %p260
      %s262 = ssub.s32 %s24, %s31
      %p263 = scmp.eq.s32.totalorder %s262, 0
      %s265 = sadd.s32 %s264, 1
      %s266 = scalar_select %p263, %s264, %s265
      %p269 = pneg %p263
      %p270 = scmp.eq.s32.totalorder %s24, 1
      %p271 = por %p269, %p270
      %p272 = scmp.ne.s32.totalorder %s264, %s267
      %p273 = scmp.eq.s32.totalorder %s24, 0
      %p274 = por %p272, %p273
      %p275 = scmp.ne.s32.totalorder %s264, %s267
      %p276 = scmp.eq.s32.totalorder %s29, 1
      %p277 = por %p275, %p276
      %p278 = scmp.ne.s32.totalorder %s267, %s268
      %p279 = scmp.eq.s32.totalorder %s29, 0
      %p280 = por %p278, %p279
      %p281 = scmp.ne.s32.totalorder %s267, %s268
      %p282 = scmp.eq.s32.totalorder %s30, 1
      %p283 = por %p281, %p282
      %p285 = scmp.ne.s32.totalorder %s268, %s284
      %p286 = scmp.eq.s32.totalorder %s30, 0
      %p287 = por %p285, %p286
      %p288 = scmp.le.s32.totalorder 1, %s24
      %p289 = scmp.lt.s32.totalorder %s24, 3
      %p290 = pnand %p288, %p289
      %p291 = pneg %p290
      // Predicated region
      $region9: #{attention_forward.1} parent=5 // pred_check
        _
      $region10: #{attention_forward.1} parent=5 // pred_check_branch
        %293 = sbr.rel (%p290) target = $region12
      $region11: #{attention_forward.1} parent=5 // pred_region
        %s294 = ssub.s32 %s24, 1
        // Predicated region
        $region13: #{attention_forward.1} parent=11 // pred_check
          %p295 = pneg %p123
        $region14: #{attention_forward.1} parent=11 // pred_check_branch
          %297 = sbr.rel (%p295) target = $region16
        $region15: #{attention_forward.1} parent=11 // pred_region
          _
        $region16: #{attention_forward.1} parent=11 // pred_fallthru
          _
        // Predicated region
        $region17: #{attention_forward.1} parent=11 // pred_check
          %p298 = pneg %p144
        $region18: #{attention_forward.1} parent=11 // pred_check_branch
          %300 = sbr.rel (%p298) target = $region20
        $region19: #{attention_forward.1} parent=11 // pred_region
          _
        $region20: #{attention_forward.1} parent=11 // pred_fallthru
          _
        // Predicated region
        $region21: #{attention_forward.1} parent=11 // pred_check
          %p301 = pneg %p165
        $region22: #{attention_forward.1} parent=11 // pred_check_branch
          %303 = sbr.rel (%p301) target = $region24
        $region23: #{attention_forward.1} parent=11 // pred_region
          _
        $region24: #{attention_forward.1} parent=11 // pred_fallthru
          _
        // Predicated region
        $region25: #{attention_forward.1} parent=11 // pred_check
          %p304 = pneg %p186
        $region26: #{attention_forward.1} parent=11 // pred_check_branch
          %306 = sbr.rel (%p304) target = $region28
        $region27: #{attention_forward.1} parent=11 // pred_region
          _
        $region28: #{attention_forward.1} parent=11 // pred_fallthru
          _
        // Predicated region
        $region29: #{attention_forward.1} parent=11 // pred_check
          %p307 = pneg %p207
        $region30: #{attention_forward.1} parent=11 // pred_check_branch
          %309 = sbr.rel (%p307) target = $region32
        $region31: #{attention_forward.1} parent=11 // pred_region
          _
        $region32: #{attention_forward.1} parent=11 // pred_fallthru
          _
        // Predicated region
        $region33: #{attention_forward.1} parent=11 // pred_check
          %p310 = pneg %p228
        $region34: #{attention_forward.1} parent=11 // pred_check_branch
          %312 = sbr.rel (%p310) target = $region36
        $region35: #{attention_forward.1} parent=11 // pred_region
          _
        $region36: #{attention_forward.1} parent=11 // pred_fallthru
          _
      $region12: #{attention_forward.1} parent=5 // pred_fallthru
        _
      %p313 = scmp.lt.s32.totalorder %s24, 2
      // Predicated region
      $region37: #{attention_forward.1} parent=5 // pred_check
        %p314 = pneg %p313
      $region38: #{attention_forward.1} parent=5 // pred_check_branch
        %316 = sbr.rel (%p314) target = $region40
      $region39: #{attention_forward.1} parent=5 // pred_region
        // Predicated region
        $region41: #{attention_forward.1} parent=39 // pred_check
          %p317 = pneg %p44
        $region42: #{attention_forward.1} parent=39 // pred_check_branch
          %319 = sbr.rel (%p317) target = $region44
        $region43: #{attention_forward.1} parent=39 // pred_region
          %p320 = scmp.lt.s32.totalorder %s24, 1
          %s321 = scalar_select %p320, %s24, 1
          %s322 = smul.addr %s321, 16
          %s323 = smul.addr %s322, 4
          %s324 = scalar_lea.vmem %s0, %s323
        $region44: #{attention_forward.1} parent=39 // pred_fallthru
          _
        // Predicated region
        $region45: #{attention_forward.1} parent=39 // pred_check
          %p325 = pneg %p70
        $region46: #{attention_forward.1} parent=39 // pred_check_branch
          %327 = sbr.rel (%p325) target = $region48
        $region47: #{attention_forward.1} parent=39 // pred_region
          %p328 = scmp.lt.s32.totalorder %s24, 1
          %s329 = scalar_select %p328, %s24, 1
          %s330 = scalar_lea.vmem %s1, %s329
        $region48: #{attention_forward.1} parent=39 // pred_fallthru
          _
        // Predicated region
        $region49: #{attention_forward.1} parent=39 // pred_check
          %p331 = pneg %p96
        $region50: #{attention_forward.1} parent=39 // pred_check_branch
          %333 = sbr.rel (%p331) target = $region52
        $region51: #{attention_forward.1} parent=39 // pred_region
          %p334 = scmp.lt.s32.totalorder %s24, 1
          %s335 = scalar_select %p334, %s24, 1
          %s336 = scalar_lea.vmem %s2, %s335
        $region52: #{attention_forward.1} parent=39 // pred_fallthru
          _
      $region40: #{attention_forward.1} parent=5 // pred_fallthru
        _
      %p337 = scmp.le.s32.totalorder 1, %s24
      %p338 = scmp.lt.s32.totalorder %s24, 3
      %p339 = pnand %p337, %p338
      %p340 = pneg %p339
      // Predicated region
      $region53: #{attention_forward.1} parent=5 // pred_check
        _
      $region54: #{attention_forward.1} parent=5 // pred_check_branch
        %342 = sbr.rel (%p339) target = $region56
      $region55: #{attention_forward.1} parent=5 // pred_region
        %s343 = ssub.s32 %s24, 1
        %p344 = scmp.lt.s32.totalorder %s29, 1
        %s345 = scalar_select %p344, %s29, 1
        %s346 = smul.addr %s345, 16
        %s347 = smul.addr %s346, 4
        %s348 = scalar_lea.vmem %s0, %s347
        %p349 = pneg %p50
        %p350 = pneg %p47
        %p351 = scmp.lt.s32.totalorder %s29, 1
        %s352 = scalar_select %p351, %s29, 1
        %s353 = scalar_lea.vmem %s1, %s352
        %p354 = pneg %p76
        %p355 = pneg %p73
        %p356 = scmp.lt.s32.totalorder %s29, 1
        %s357 = scalar_select %p356, %s29, 1
        %s358 = scalar_lea.vmem %s2, %s357
        %p359 = pneg %p102
        %p360 = pneg %p99
        %p361 = pneg %p123
        %p362 = pneg %p120
        %p363 = pneg %p144
        %p364 = pneg %p141
        %p365 = pneg %p165
        %p366 = pneg %p162
        %p367 = pneg %p186
        %p368 = pneg %p183
        %p369 = pneg %p207
        %p370 = pneg %p204
        %p371 = pneg %p228
        %p372 = pneg %p225
        %p373 = pneg %p254
        %p374 = pneg %p251
        %s375 = sand.u32 %s241, 1
        %s376 = scalar_lea.sflag [#allocation4], %s375
        %s377 = sand.u32 %s241, 1
        %s378 = scalar_lea.vmem [#allocation3], %s377
        %p379 = pneg %p280
        %p380 = pneg %p277
        %s381 = sand.u32 %s267, 1
        %s382 = scalar_lea.sflag [#allocation6], %s381
        %s383 = sand.u32 %s267, 1
        %s384 = scalar_lea.vmem [#allocation5], %s383
        %p385 = scmp.lt.s32.totalorder %s29, 1
        %s386 = scalar_select %p385, %s29, 1
        %s387 = smul.addr %s386, 16
        %s388 = smul.addr %s387, 4
        %s389 = scalar_lea.vmem %s0, %s388
        %p390 = scmp.lt.s32.totalorder %s29, 1
        %s391 = scalar_select %p390, %s29, 1
        %s392 = scalar_lea.vmem %s1, %s391
        %p393 = scmp.lt.s32.totalorder %s29, 1
        %s394 = scalar_select %p393, %s29, 1
        %s395 = scalar_lea.vmem %s2, %s394
        %v397 = vld [vmem:[%s389] sm:$0xf]
        %v398 = vld [vmem:[%s389 + $0x4] sm:$0xf]
        %v399 = vld [vmem:[%s389 + $0x8] sm:$0xf]
        %v400 = vld [vmem:[%s389 + $0xc] sm:$0xf]
        %v401 = vld [vmem:[%s389 + $0x10] sm:$0xf]
        %v402 = vld [vmem:[%s389 + $0x14] sm:$0xf]
        %v403 = vld [vmem:[%s389 + $0x18] sm:$0xf]
        %v404 = vld [vmem:[%s389 + $0x1c] sm:$0xf]
        %v405 = vld [vmem:[%s389 + $0x20] sm:$0xf]
        %v406 = vld [vmem:[%s389 + $0x24] sm:$0xf]
        %v407 = vld [vmem:[%s389 + $0x28] sm:$0xf]
        %v408 = vld [vmem:[%s389 + $0x2c] sm:$0xf]
        %v409 = vld [vmem:[%s389 + $0x30] sm:$0xf]
        %v410 = vld [vmem:[%s389 + $0x34] sm:$0xf]
        %v411 = vld [vmem:[%s389 + $0x38] sm:$0xf]
        %v412 = vld [vmem:[%s389 + $0x3c] sm:$0xf]
        %v413 = vld [vmem:[%s392] sm:$0x1]
        %v414 = vld [vmem:[%s395] sm:$0x1]
        %v415 = vld [vmem:[%s3] sm:$0xf]
        %v416 = vld [vmem:[%s3 + $0x4] sm:$0xf]
        %v417 = vld [vmem:[%s3 + $0x8] sm:$0xf]
        %v418 = vld [vmem:[%s3 + $0xc] sm:$0xf]
        %v419 = vld [vmem:[%s3 + $0x10] sm:$0xf]
        %v420 = vld [vmem:[%s3 + $0x14] sm:$0xf]
        %v421 = vld [vmem:[%s3 + $0x18] sm:$0xf]
        %v422 = vld [vmem:[%s3 + $0x1c] sm:$0xf]
        %v423 = vld [vmem:[%s3 + $0x20] sm:$0xf]
        %v424 = vld [vmem:[%s3 + $0x24] sm:$0xf]
        %v425 = vld [vmem:[%s3 + $0x28] sm:$0xf]
        %v426 = vld [vmem:[%s3 + $0x2c] sm:$0xf]
        %v427 = vld [vmem:[%s3 + $0x30] sm:$0xf]
        %v428 = vld [vmem:[%s3 + $0x34] sm:$0xf]
        %v429 = vld [vmem:[%s3 + $0x38] sm:$0xf]
        %v430 = vld [vmem:[%s3 + $0x3c] sm:$0xf]
        %v431 = vld [vmem:[%s4] sm:$0x1]
        %v433 = vlaneseq
        %v434 = vshrl.u32 %v433, 7
        %v435 = vsub.s32 0, %v434
        %v436 = vrot.slane %v431, %v435
        %v454 = vunpack.c.l.b16 %v397
        %v455 = vunpack.c.l.b16 %v398
        %v456 = vunpack.c.l.b16 %v399
        %v457 = vunpack.c.l.b16 %v400
        %v458 = vunpack.c.l.b16 %v401
        %v459 = vunpack.c.l.b16 %v402
        %v460 = vunpack.c.l.b16 %v403
        %v461 = vunpack.c.l.b16 %v404
        %v462 = vunpack.c.l.b16 %v405
        %v463 = vunpack.c.l.b16 %v406
        %v464 = vunpack.c.l.b16 %v407
        %v465 = vunpack.c.l.b16 %v408
        %v466 = vunpack.c.l.b16 %v409
        %v467 = vunpack.c.l.b16 %v410
        %v468 = vunpack.c.l.b16 %v411
        %v469 = vunpack.c.l.b16 %v412
        %v470 = vpack.c.b16 %v455, %v454
        %v471 = vpack.c.b16 %v457, %v456
        %v472 = vpack.c.b16 %v459, %v458
        %v473 = vpack.c.b16 %v461, %v460
        %v474 = vpack.c.b16 %v463, %v462
        %v475 = vpack.c.b16 %v465, %v464
        %v476 = vpack.c.b16 %v467, %v466
        %v477 = vpack.c.b16 %v469, %v468
        %v502 = vunpack.c.l.b16 %v415
        %v503 = vunpack.c.l.b16 %v416
        %v504 = vunpack.c.l.b16 %v417
        %v505 = vunpack.c.l.b16 %v418
        %v506 = vunpack.c.l.b16 %v419
        %v507 = vunpack.c.l.b16 %v420
        %v508 = vunpack.c.l.b16 %v421
        %v509 = vunpack.c.l.b16 %v422
        %v510 = vunpack.c.l.b16 %v423
        %v511 = vunpack.c.l.b16 %v424
        %v512 = vunpack.c.l.b16 %v425
        %v513 = vunpack.c.l.b16 %v426
        %v514 = vunpack.c.l.b16 %v427
        %v515 = vunpack.c.l.b16 %v428
        %v516 = vunpack.c.l.b16 %v429
        %v517 = vunpack.c.l.b16 %v430
        %v518 = vpack.c.b16 %v503, %v502
        %v519 = vpack.c.b16 %v505, %v504
        %v520 = vpack.c.b16 %v507, %v506
        %v521 = vpack.c.b16 %v509, %v508
        %v522 = vpack.c.b16 %v511, %v510
        %v523 = vpack.c.b16 %v513, %v512
        %v524 = vpack.c.b16 %v515, %v514
        %v525 = vpack.c.b16 %v517, %v516
        %534 = vmatprep.subr.bf16.mxu0 0
        %535 = vmatpush1.bf16.msra.mxu0 %v518
        %536 = vmatprep.subr.bf16.mxu0 0
        %537 = vmatpush1.bf16.msra.mxu0 %v519
        %538 = vmatprep.subr.bf16.mxu0 0
        %539 = vmatpush1.bf16.msra.mxu0 %v520
        %540 = vmatprep.subr.bf16.mxu0 0
        %541 = vmatpush1.bf16.msra.mxu0 %v521
        %542 = vmatprep.subr.bf16.mxu0 0
        %543 = vmatpush1.bf16.msra.mxu0 %v522
        %544 = vmatprep.subr.bf16.mxu0 0
        %545 = vmatpush1.bf16.msra.mxu0 %v523
        %546 = vmatprep.subr.bf16.mxu0 0
        %547 = vmatpush1.bf16.msra.mxu0 %v524
        %548 = vmatprep.subr.bf16.mxu0 0
        %549 = vmatpush1.bf16.msra.mxu0 %v525
        %550 = vmatprep.subr.bf16.mxu0 0
        %551 = vmatpush1.bf16.msra.mxu0 0
        %552 = vmatprep.subr.bf16.mxu0 0
        %553 = vmatpush1.bf16.msra.mxu0 0
        %554 = vmatprep.subr.bf16.mxu0 0
        %555 = vmatpush1.bf16.msra.mxu0 0
        %556 = vmatprep.subr.bf16.mxu0 0
        %557 = vmatpush1.bf16.msra.mxu0 0
        %558 = vmatprep.subr.bf16.mxu0 0
        %559 = vmatpush1.bf16.msra.mxu0 0
        %560 = vmatprep.subr.bf16.mxu0 0
        %561 = vmatpush1.bf16.msra.mxu0 0
        %562 = vmatprep.subr.bf16.mxu0 0
        %563 = vmatpush1.bf16.msra.mxu0 0
        %564 = vmatprep.subr.bf16.mxu0 0
        %565 = vmatpush1.bf16.msra.mxu0 0
        %566 = vmatprep.mubr.bf16.mxu0 0
        %567 = vmatmul.mubr.bf16.gmra.mrb[0].mxu0 %v470
        %v568 = vpop.f32.mrb[0].mxu0
        %v569 = vadd.f32 %v436, %v568
        %v570 = vpop.f32.mrb[0].mxu0
        %v571 = vpop.f32.mrb[0].mxu0
        %v572 = vadd.f32 %v436, %v571
        %v573 = vpop.f32.mrb[0].mxu0
        %574 = vmatprep.mubr.bf16.mxu0 0
        %575 = vmatmul.mubr.bf16.gmra.mrb[0].mxu0 %v471
        %v576 = vpop.f32.mrb[0].mxu0
        %v577 = vadd.f32 %v436, %v576
        %v578 = vpop.f32.mrb[0].mxu0
        %v579 = vpop.f32.mrb[0].mxu0
        %v580 = vadd.f32 %v436, %v579
        %v581 = vpop.f32.mrb[0].mxu0
        %582 = vmatprep.mubr.bf16.mxu0 0
        %583 = vmatmul.mubr.bf16.gmra.mrb[0].mxu0 %v472
        %v584 = vpop.f32.mrb[0].mxu0
        %v585 = vadd.f32 %v436, %v584
        %v586 = vpop.f32.mrb[0].mxu0
        %v587 = vpop.f32.mrb[0].mxu0
        %v588 = vadd.f32 %v436, %v587
        %v589 = vpop.f32.mrb[0].mxu0
        %590 = vmatprep.mubr.bf16.mxu0 0
        %591 = vmatmul.mubr.bf16.gmra.mrb[0].mxu0 %v473
        %v592 = vpop.f32.mrb[0].mxu0
        %v593 = vadd.f32 %v436, %v592
        %v594 = vpop.f32.mrb[0].mxu0
        %v595 = vpop.f32.mrb[0].mxu0
        %v596 = vadd.f32 %v436, %v595
        %v597 = vpop.f32.mrb[0].mxu0
        %598 = vmatprep.mubr.bf16.mxu0 0
        %599 = vmatmul.mubr.bf16.gmra.mrb[0].mxu0 %v474
        %v600 = vpop.f32.mrb[0].mxu0
        %v601 = vadd.f32 %v436, %v600
        %v602 = vpop.f32.mrb[0].mxu0
        %v603 = vpop.f32.mrb[0].mxu0
        %v604 = vadd.f32 %v436, %v603
        %v605 = vpop.f32.mrb[0].mxu0
        %606 = vmatprep.mubr.bf16.mxu0 0
        %607 = vmatmul.mubr.bf16.gmra.mrb[0].mxu0 %v475
        %v608 = vpop.f32.mrb[0].mxu0
        %v609 = vadd.f32 %v436, %v608
        %v610 = vpop.f32.mrb[0].mxu0
        %v611 = vpop.f32.mrb[0].mxu0
        %v612 = vadd.f32 %v436, %v611
        %v613 = vpop.f32.mrb[0].mxu0
        %614 = vmatprep.mubr.bf16.mxu0 0
        %615 = vmatmul.mubr.bf16.gmra.mrb[0].mxu0 %v476
        %v616 = vpop.f32.mrb[0].mxu0
        %v617 = vadd.f32 %v436, %v616
        %v618 = vpop.f32.mrb[0].mxu0
        %v619 = vpop.f32.mrb[0].mxu0
        %v620 = vadd.f32 %v436, %v619
        %v621 = vpop.f32.mrb[0].mxu0
        %622 = vmatprep.mubr.bf16.mxu0 0
        %623 = vmatmul.mubr.bf16.gmra.mrb[0].mxu0 %v477
        %v624 = vpop.f32.mrb[0].mxu0
        %v625 = vadd.f32 %v436, %v624
        %v626 = vpop.f32.mrb[0].mxu0
        %v627 = vpop.f32.mrb[0].mxu0
        %v628 = vadd.f32 %v436, %v627
        %v629 = vpop.f32.mrb[0].mxu0
        %630 = vdwg.mxu0
        %v631 = vmax.f32 %v569, 0.0
        %v632 = vmax.f32 %v572, 0.0
        %v633 = vmax.f32 %v577, 0.0
        %v634 = vmax.f32 %v580, 0.0
        %v635 = vmax.f32 %v585, 0.0
        %v636 = vmax.f32 %v588, 0.0
        %v637 = vmax.f32 %v593, 0.0
        %v638 = vmax.f32 %v596, 0.0
        %v639 = vmax.f32 %v601, 0.0
        %v640 = vmax.f32 %v604, 0.0
        %v641 = vmax.f32 %v609, 0.0
        %v642 = vmax.f32 %v612, 0.0
        %v643 = vmax.f32 %v617, 0.0
        %v644 = vmax.f32 %v620, 0.0
        %v645 = vmax.f32 %v625, 0.0
        %v646 = vmax.f32 %v628, 0.0
        %v647 = vpack.c.bf16 %v632, %v631
        %v648 = vpack.c.bf16 %v634, %v633
        %v649 = vpack.c.bf16 %v636, %v635
        %v650 = vpack.c.bf16 %v638, %v637
        %v651 = vpack.c.bf16 %v640, %v639
        %v652 = vpack.c.bf16 %v642, %v641
        %v653 = vpack.c.bf16 %v644, %v643
        %v654 = vpack.c.bf16 %v646, %v645
        %v655 = vld [vmem:[%s5] sm:$0xf]
        %v656 = vld [vmem:[%s5 + $0x4] sm:$0xf]
        %v657 = vld [vmem:[%s5 + $0x8] sm:$0xf]
        %v658 = vld [vmem:[%s5 + $0xc] sm:$0xf]
        %v659 = vld [vmem:[%s5 + $0x10] sm:$0xf]
        %v660 = vld [vmem:[%s5 + $0x14] sm:$0xf]
        %v661 = vld [vmem:[%s5 + $0x18] sm:$0xf]
        %v662 = vld [vmem:[%s5 + $0x1c] sm:$0xf]
        %v663 = vld [vmem:[%s5 + $0x20] sm:$0xf]
        %v664 = vld [vmem:[%s5 + $0x24] sm:$0xf]
        %v665 = vld [vmem:[%s5 + $0x28] sm:$0xf]
        %v666 = vld [vmem:[%s5 + $0x2c] sm:$0xf]
        %v667 = vld [vmem:[%s5 + $0x30] sm:$0xf]
        %v668 = vld [vmem:[%s5 + $0x34] sm:$0xf]
        %v669 = vld [vmem:[%s5 + $0x38] sm:$0xf]
        %v670 = vld [vmem:[%s5 + $0x3c] sm:$0xf]
        %v671 = vld [vmem:[%s6] sm:$0x1]
        %v673 = vlaneseq
        %v674 = vshrl.u32 %v673, 7
        %v675 = vsub.s32 0, %v674
        %v676 = vrot.slane %v671, %v675
        %v694 = vunpack.c.l.b16 %v655
        %v695 = vunpack.c.l.b16 %v656
        %v696 = vunpack.c.l.b16 %v657
        %v697 = vunpack.c.l.b16 %v658
        %v698 = vunpack.c.l.b16 %v659
        %v699 = vunpack.c.l.b16 %v660
        %v700 = vunpack.c.l.b16 %v661
        %v701 = vunpack.c.l.b16 %v662
        %v702 = vunpack.c.l.b16 %v663
        %v703 = vunpack.c.l.b16 %v664
        %v704 = vunpack.c.l.b16 %v665
        %v705 = vunpack.c.l.b16 %v666
        %v706 = vunpack.c.l.b16 %v667
        %v707 = vunpack.c.l.b16 %v668
        %v708 = vunpack.c.l.b16 %v669
        %v709 = vunpack.c.l.b16 %v670
        %v710 = vpack.c.b16 %v695, %v694
        %v711 = vpack.c.b16 %v697, %v696
        %v712 = vpack.c.b16 %v699, %v698
        %v713 = vpack.c.b16 %v701, %v700
        %v714 = vpack.c.b16 %v703, %v702
        %v715 = vpack.c.b16 %v705, %v704
        %v716 = vpack.c.b16 %v707, %v706
        %v717 = vpack.c.b16 %v709, %v708
        %726 = vmatprep.subr.bf16.mxu0 0
        %727 = vmatpush1.bf16.msra.mxu0 %v710
        %728 = vmatprep.subr.bf16.mxu0 0
        %729 = vmatpush1.bf16.msra.mxu0 %v711
        %730 = vmatprep.subr.bf16.mxu0 0
        %731 = vmatpush1.bf16.msra.mxu0 %v712
        %732 = vmatprep.subr.bf16.mxu0 0
        %733 = vmatpush1.bf16.msra.mxu0 %v713
        %734 = vmatprep.subr.bf16.mxu0 0
        %735 = vmatpush1.bf16.msra.mxu0 %v714
        %736 = vmatprep.subr.bf16.mxu0 0
        %737 = vmatpush1.bf16.msra.mxu0 %v715
        %738 = vmatprep.subr.bf16.mxu0 0
        %739 = vmatpush1.bf16.msra.mxu0 %v716
        %740 = vmatprep.subr.bf16.mxu0 0
        %741 = vmatpush1.bf16.msra.mxu0 %v717
        %742 = vmatprep.subr.bf16.mxu0 0
        %743 = vmatpush1.bf16.msra.mxu0 0
        %744 = vmatprep.subr.bf16.mxu0 0
        %745 = vmatpush1.bf16.msra.mxu0 0
        %746 = vmatprep.subr.bf16.mxu0 0
        %747 = vmatpush1.bf16.msra.mxu0 0
        %748 = vmatprep.subr.bf16.mxu0 0
        %749 = vmatpush1.bf16.msra.mxu0 0
        %750 = vmatprep.subr.bf16.mxu0 0
        %751 = vmatpush1.bf16.msra.mxu0 0
        %752 = vmatprep.subr.bf16.mxu0 0
        %753 = vmatpush1.bf16.msra.mxu0 0
        %754 = vmatprep.subr.bf16.mxu0 0
        %755 = vmatpush1.bf16.msra.mxu0 0
        %756 = vmatprep.subr.bf16.mxu0 0
        %757 = vmatpush1.bf16.msra.mxu0 0
        %758 = vmatprep.mubr.bf16.mxu0 0
        %759 = vmatmul.mubr.bf16.gmra.mrb[0].mxu0 %v647
        %v760 = vpop.f32.mrb[0].mxu0
        %v761 = vadd.f32 %v676, %v760
        %v762 = vpop.f32.mrb[0].mxu0
        %v763 = vpop.f32.mrb[0].mxu0
        %v764 = vadd.f32 %v676, %v763
        %v765 = vpop.f32.mrb[0].mxu0
        %766 = vmatprep.mubr.bf16.mxu0 0
        %767 = vmatmul.mubr.bf16.gmra.mrb[0].mxu0 %v648
        %v768 = vpop.f32.mrb[0].mxu0
        %v769 = vadd.f32 %v676, %v768
        %v770 = vpop.f32.mrb[0].mxu0
        %v771 = vpop.f32.mrb[0].mxu0
        %v772 = vadd.f32 %v676, %v771
        %v773 = vpop.f32.mrb[0].mxu0
        %774 = vmatprep.mubr.bf16.mxu0 0
        %775 = vmatmul.mubr.bf16.gmra.mrb[0].mxu0 %v649
        %v776 = vpop.f32.mrb[0].mxu0
        %v777 = vadd.f32 %v676, %v776
        %v778 = vpop.f32.mrb[0].mxu0
        %v779 = vpop.f32.mrb[0].mxu0
        %v780 = vadd.f32 %v676, %v779
        %v781 = vpop.f32.mrb[0].mxu0
        %782 = vmatprep.mubr.bf16.mxu0 0
        %783 = vmatmul.mubr.bf16.gmra.mrb[0].mxu0 %v650
        %v784 = vpop.f32.mrb[0].mxu0
        %v785 = vadd.f32 %v676, %v784
        %v786 = vpop.f32.mrb[0].mxu0
        %v787 = vpop.f32.mrb[0].mxu0
        %v788 = vadd.f32 %v676, %v787
        %v789 = vpop.f32.mrb[0].mxu0
        %790 = vmatprep.mubr.bf16.mxu0 0
        %791 = vmatmul.mubr.bf16.gmra.mrb[0].mxu0 %v651
        %v792 = vpop.f32.mrb[0].mxu0
        %v793 = vadd.f32 %v676, %v792
        %v794 = vpop.f32.mrb[0].mxu0
        %v795 = vpop.f32.mrb[0].mxu0
        %v796 = vadd.f32 %v676, %v795
        %v797 = vpop.f32.mrb[0].mxu0
        %798 = vmatprep.mubr.bf16.mxu0 0
        %799 = vmatmul.mubr.bf16.gmra.mrb[0].mxu0 %v652
        %v800 = vpop.f32.mrb[0].mxu0
        %v801 = vadd.f32 %v676, %v800
        %v802 = vpop.f32.mrb[0].mxu0
        %v803 = vpop.f32.mrb[0].mxu0
        %v804 = vadd.f32 %v676, %v803
        %v805 = vpop.f32.mrb[0].mxu0
        %806 = vmatprep.mubr.bf16.mxu0 0
        %807 = vmatmul.mubr.bf16.gmra.mrb[0].mxu0 %v653
        %v808 = vpop.f32.mrb[0].mxu0
        %v809 = vadd.f32 %v676, %v808
        %v810 = vpop.f32.mrb[0].mxu0
        %v811 = vpop.f32.mrb[0].mxu0
        %v812 = vadd.f32 %v676, %v811
        %v813 = vpop.f32.mrb[0].mxu0
        %814 = vmatprep.mubr.bf16.mxu0 0
        %815 = vmatmul.mubr.bf16.gmra.mrb[0].mxu0 %v654
        %v816 = vpop.f32.mrb[0].mxu0
        %v817 = vadd.f32 %v676, %v816
        %v818 = vpop.f32.mrb[0].mxu0
        %v819 = vpop.f32.mrb[0].mxu0
        %v820 = vadd.f32 %v676, %v819
        %v821 = vpop.f32.mrb[0].mxu0
        %822 = vdwg.mxu0
        %v824 = vlaneseq
        %v825 = vshrl.u32 %v824, 7
        %v826 = vsub.s32 0, %v825
        %v827 = vrot.slane %v413, %v826
        %v829 = vadd.f32 %v761, %v827
        %v830 = vadd.f32 %v764, %v827
        %v831 = vadd.f32 %v769, %v827
        %v832 = vadd.f32 %v772, %v827
        %v833 = vadd.f32 %v777, %v827
        %v834 = vadd.f32 %v780, %v827
        %v835 = vadd.f32 %v785, %v827
        %v836 = vadd.f32 %v788, %v827
        %v837 = vadd.f32 %v793, %v827
        %v838 = vadd.f32 %v796, %v827
        %v839 = vadd.f32 %v801, %v827
        %v840 = vadd.f32 %v804, %v827
        %v841 = vadd.f32 %v809, %v827
        %v842 = vadd.f32 %v812, %v827
        %v843 = vadd.f32 %v817, %v827
        %v844 = vadd.f32 %v820, %v827
        %v845 = vtanh.pop %v829
        %v846 = vtanh.pop %v830
        %v847 = vtanh.pop %v831
        %v848 = vtanh.pop %v832
        %v849 = vtanh.pop %v833
        %v850 = vtanh.pop %v834
        %v851 = vtanh.pop %v835
        %v852 = vtanh.pop %v836
        %v853 = vtanh.pop %v837
        %v854 = vtanh.pop %v838
        %v855 = vtanh.pop %v839
        %v856 = vtanh.pop %v840
        %v857 = vtanh.pop %v841
        %v858 = vtanh.pop %v842
        %v859 = vtanh.pop %v843
        %v860 = vtanh.pop %v844
        %v861 = vld [vmem:[%s7] sm:$0x1]
        %v863 = vlaneseq
        %v864 = vshrl.u32 %v863, 7
        %v865 = vsub.s32 0, %v864
        %v866 = vrot.slane %v861, %v865
        %v868 = vmul.f32 %v845, %v866
        %v869 = vmul.f32 %v846, %v866
        %v870 = vmul.f32 %v847, %v866
        %v871 = vmul.f32 %v848, %v866
        %v872 = vmul.f32 %v849, %v866
        %v873 = vmul.f32 %v850, %v866
        %v874 = vmul.f32 %v851, %v866
        %v875 = vmul.f32 %v852, %v866
        %v876 = vmul.f32 %v853, %v866
        %v877 = vmul.f32 %v854, %v866
        %v878 = vmul.f32 %v855, %v866
        %v879 = vmul.f32 %v856, %v866
        %v880 = vmul.f32 %v857, %v866
        %v881 = vmul.f32 %v858, %v866
        %v882 = vmul.f32 %v859, %v866
        %v883 = vmul.f32 %v860, %v866
        %884 = vadd.xlane.f32.xlu0 %v868
        %v885 = vpop.xlane.xlu0 %884
        %886 = vadd.xlane.f32.xlu0 %v869
        %v887 = vpop.xlane.xlu0 %886
        %888 = vadd.xlane.f32.xlu0 %v870
        %v889 = vpop.xlane.xlu0 %888
        %890 = vadd.xlane.f32.xlu0 %v871
        %v891 = vpop.xlane.xlu0 %890
        %892 = vadd.xlane.f32.xlu0 %v872
        %v893 = vpop.xlane.xlu0 %892
        %894 = vadd.xlane.f32.xlu0 %v873
        %v895 = vpop.xlane.xlu0 %894
        %896 = vadd.xlane.f32.xlu0 %v874
        %v897 = vpop.xlane.xlu0 %896
        %898 = vadd.xlane.f32.xlu0 %v875
        %v899 = vpop.xlane.xlu0 %898
        %900 = vadd.xlane.f32.xlu0 %v876
        %v901 = vpop.xlane.xlu0 %900
        %902 = vadd.xlane.f32.xlu0 %v877
        %v903 = vpop.xlane.xlu0 %902
        %904 = vadd.xlane.f32.xlu0 %v878
        %v905 = vpop.xlane.xlu0 %904
        %906 = vadd.xlane.f32.xlu0 %v879
        %v907 = vpop.xlane.xlu0 %906
        %908 = vadd.xlane.f32.xlu0 %v880
        %v909 = vpop.xlane.xlu0 %908
        %910 = vadd.xlane.f32.xlu0 %v881
        %v911 = vpop.xlane.xlu0 %910
        %912 = vadd.xlane.f32.xlu0 %v882
        %v913 = vpop.xlane.xlu0 %912
        %914 = vadd.xlane.f32.xlu0 %v883
        %v915 = vpop.xlane.xlu0 %914
        %s916 = sld [smem:[#allocation2]]
        %v917 = vstv %s916
        %v918 = vadd.f32 %v885, %v917
        %v919 = vadd.f32 %v887, %v917
        %v920 = vadd.f32 %v889, %v917
        %v921 = vadd.f32 %v891, %v917
        %v922 = vadd.f32 %v893, %v917
        %v923 = vadd.f32 %v895, %v917
        %v924 = vadd.f32 %v897, %v917
        %v925 = vadd.f32 %v899, %v917
        %v926 = vadd.f32 %v901, %v917
        %v927 = vadd.f32 %v903, %v917
        %v928 = vadd.f32 %v905, %v917
        %v929 = vadd.f32 %v907, %v917
        %v930 = vadd.f32 %v909, %v917
        %v931 = vadd.f32 %v911, %v917
        %v932 = vadd.f32 %v913, %v917
        %v933 = vadd.f32 %v915, %v917
        %vm934 = vcmp.eq.f32.partialorder %v414, 0.0
        %v951 = vlaneseq
        %v952 = vshrl.u32 %v951, 7
        %v953 = vsub.s32 0, %v952
        %v954 = vrot.slane %v918, %v953
        %v955 = vlaneseq
        %v956 = vshrl.u32 %v955, 7
        %v957 = vsub.s32 1, %v956
        %v958 = vrot.slane %v918, %v957
        %v959 = vlaneseq
        %v960 = vshrl.u32 %v959, 7
        %v961 = vsub.s32 2, %v960
        %v962 = vrot.slane %v918, %v961
        %v963 = vlaneseq
        %v964 = vshrl.u32 %v963, 7
        %v965 = vsub.s32 3, %v964
        %v966 = vrot.slane %v918, %v965
        %v967 = vlaneseq
        %v968 = vshrl.u32 %v967, 7
        %v969 = vsub.s32 4, %v968
        %v970 = vrot.slane %v918, %v969
        %v971 = vlaneseq
        %v972 = vshrl.u32 %v971, 7
        %v973 = vsub.s32 5, %v972
        %v974 = vrot.slane %v918, %v973
        %v975 = vlaneseq
        %v976 = vshrl.u32 %v975, 7
        %v977 = vsub.s32 6, %v976
        %v978 = vrot.slane %v918, %v977
        %v979 = vlaneseq
        %v980 = vshrl.u32 %v979, 7
        %v981 = vsub.s32 7, %v980
        %v982 = vrot.slane %v918, %v981
        %v983 = vlaneseq
        %v984 = vshrl.u32 %v983, 7
        %v985 = vsub.s32 0, %v984
        %v986 = vrot.slane %v919, %v985
        %v987 = vlaneseq
        %v988 = vshrl.u32 %v987, 7
        %v989 = vsub.s32 1, %v988
        %v990 = vrot.slane %v919, %v989
        %v991 = vlaneseq
        %v992 = vshrl.u32 %v991, 7
        %v993 = vsub.s32 2, %v992
        %v994 = vrot.slane %v919, %v993
        %v995 = vlaneseq
        %v996 = vshrl.u32 %v995, 7
        %v997 = vsub.s32 3, %v996
        %v998 = vrot.slane %v919, %v997
        %v999 = vlaneseq
        %v1000 = vshrl.u32 %v999, 7
        %v1001 = vsub.s32 4, %v1000
        %v1002 = vrot.slane %v919, %v1001
        %v1003 = vlaneseq
        %v1004 = vshrl.u32 %v1003, 7
        %v1005 = vsub.s32 5, %v1004
        %v1006 = vrot.slane %v919, %v1005
        %v1007 = vlaneseq
        %v1008 = vshrl.u32 %v1007, 7
        %v1009 = vsub.s32 6, %v1008
        %v1010 = vrot.slane %v919, %v1009
        %v1011 = vlaneseq
        %v1012 = vshrl.u32 %v1011, 7
        %v1013 = vsub.s32 7, %v1012
        %v1014 = vrot.slane %v919, %v1013
        %v1015 = vlaneseq
        %v1016 = vshrl.u32 %v1015, 7
        %v1017 = vsub.s32 0, %v1016
        %v1018 = vrot.slane %v920, %v1017
        %v1019 = vlaneseq
        %v1020 = vshrl.u32 %v1019, 7
        %v1021 = vsub.s32 1, %v1020
        %v1022 = vrot.slane %v920, %v1021
        %v1023 = vlaneseq
        %v1024 = vshrl.u32 %v1023, 7
        %v1025 = vsub.s32 2, %v1024
        %v1026 = vrot.slane %v920, %v1025
        %v1027 = vlaneseq
        %v1028 = vshrl.u32 %v1027, 7
        %v1029 = vsub.s32 3, %v1028
        %v1030 = vrot.slane %v920, %v1029
        %v1031 = vlaneseq
        %v1032 = vshrl.u32 %v1031, 7
        %v1033 = vsub.s32 4, %v1032
        %v1034 = vrot.slane %v920, %v1033
        %v1035 = vlaneseq
        %v1036 = vshrl.u32 %v1035, 7
        %v1037 = vsub.s32 5, %v1036
        %v1038 = vrot.slane %v920, %v1037
        %v1039 = vlaneseq
        %v1040 = vshrl.u32 %v1039, 7
        %v1041 = vsub.s32 6, %v1040
        %v1042 = vrot.slane %v920, %v1041
        %v1043 = vlaneseq
        %v1044 = vshrl.u32 %v1043, 7
        %v1045 = vsub.s32 7, %v1044
        %v1046 = vrot.slane %v920, %v1045
        %v1047 = vlaneseq
        %v1048 = vshrl.u32 %v1047, 7
        %v1049 = vsub.s32 0, %v1048
        %v1050 = vrot.slane %v921, %v1049
        %v1051 = vlaneseq
        %v1052 = vshrl.u32 %v1051, 7
        %v1053 = vsub.s32 1, %v1052
        %v1054 = vrot.slane %v921, %v1053
        %v1055 = vlaneseq
        %v1056 = vshrl.u32 %v1055, 7
        %v1057 = vsub.s32 2, %v1056
        %v1058 = vrot.slane %v921, %v1057
        %v1059 = vlaneseq
        %v1060 = vshrl.u32 %v1059, 7
        %v1061 = vsub.s32 3, %v1060
        %v1062 = vrot.slane %v921, %v1061
        %v1063 = vlaneseq
        %v1064 = vshrl.u32 %v1063, 7
        %v1065 = vsub.s32 4, %v1064
        %v1066 = vrot.slane %v921, %v1065
        %v1067 = vlaneseq
        %v1068 = vshrl.u32 %v1067, 7
        %v1069 = vsub.s32 5, %v1068
        %v1070 = vrot.slane %v921, %v1069
        %v1071 = vlaneseq
        %v1072 = vshrl.u32 %v1071, 7
        %v1073 = vsub.s32 6, %v1072
        %v1074 = vrot.slane %v921, %v1073
        %v1075 = vlaneseq
        %v1076 = vshrl.u32 %v1075, 7
        %v1077 = vsub.s32 7, %v1076
        %v1078 = vrot.slane %v921, %v1077
        %v1079 = vlaneseq
        %v1080 = vshrl.u32 %v1079, 7
        %v1081 = vsub.s32 0, %v1080
        %v1082 = vrot.slane %v922, %v1081
        %v1083 = vlaneseq
        %v1084 = vshrl.u32 %v1083, 7
        %v1085 = vsub.s32 1, %v1084
        %v1086 = vrot.slane %v922, %v1085
        %v1087 = vlaneseq
        %v1088 = vshrl.u32 %v1087, 7
        %v1089 = vsub.s32 2, %v1088
        %v1090 = vrot.slane %v922, %v1089
        %v1091 = vlaneseq
        %v1092 = vshrl.u32 %v1091, 7
        %v1093 = vsub.s32 3, %v1092
        %v1094 = vrot.slane %v922, %v1093
        %v1095 = vlaneseq
        %v1096 = vshrl.u32 %v1095, 7
        %v1097 = vsub.s32 4, %v1096
        %v1098 = vrot.slane %v922, %v1097
        %v1099 = vlaneseq
        %v1100 = vshrl.u32 %v1099, 7
        %v1101 = vsub.s32 5, %v1100
        %v1102 = vrot.slane %v922, %v1101
        %v1103 = vlaneseq
        %v1104 = vshrl.u32 %v1103, 7
        %v1105 = vsub.s32 6, %v1104
        %v1106 = vrot.slane %v922, %v1105
        %v1107 = vlaneseq
        %v1108 = vshrl.u32 %v1107, 7
        %v1109 = vsub.s32 7, %v1108
        %v1110 = vrot.slane %v922, %v1109
        %v1111 = vlaneseq
        %v1112 = vshrl.u32 %v1111, 7
        %v1113 = vsub.s32 0, %v1112
        %v1114 = vrot.slane %v923, %v1113
        %v1115 = vlaneseq
        %v1116 = vshrl.u32 %v1115, 7
        %v1117 = vsub.s32 1, %v1116
        %v1118 = vrot.slane %v923, %v1117
        %v1119 = vlaneseq
        %v1120 = vshrl.u32 %v1119, 7
        %v1121 = vsub.s32 2, %v1120
        %v1122 = vrot.slane %v923, %v1121
        %v1123 = vlaneseq
        %v1124 = vshrl.u32 %v1123, 7
        %v1125 = vsub.s32 3, %v1124
        %v1126 = vrot.slane %v923, %v1125
        %v1127 = vlaneseq
        %v1128 = vshrl.u32 %v1127, 7
        %v1129 = vsub.s32 4, %v1128
        %v1130 = vrot.slane %v923, %v1129
        %v1131 = vlaneseq
        %v1132 = vshrl.u32 %v1131, 7
        %v1133 = vsub.s32 5, %v1132
        %v1134 = vrot.slane %v923, %v1133
        %v1135 = vlaneseq
        %v1136 = vshrl.u32 %v1135, 7
        %v1137 = vsub.s32 6, %v1136
        %v1138 = vrot.slane %v923, %v1137
        %v1139 = vlaneseq
        %v1140 = vshrl.u32 %v1139, 7
        %v1141 = vsub.s32 7, %v1140
        %v1142 = vrot.slane %v923, %v1141
        %v1143 = vlaneseq
        %v1144 = vshrl.u32 %v1143, 7
        %v1145 = vsub.s32 0, %v1144
        %v1146 = vrot.slane %v924, %v1145
        %v1147 = vlaneseq
        %v1148 = vshrl.u32 %v1147, 7
        %v1149 = vsub.s32 1, %v1148
        %v1150 = vrot.slane %v924, %v1149
        %v1151 = vlaneseq
        %v1152 = vshrl.u32 %v1151, 7
        %v1153 = vsub.s32 2, %v1152
        %v1154 = vrot.slane %v924, %v1153
        %v1155 = vlaneseq
        %v1156 = vshrl.u32 %v1155, 7
        %v1157 = vsub.s32 3, %v1156
        %v1158 = vrot.slane %v924, %v1157
        %v1159 = vlaneseq
        %v1160 = vshrl.u32 %v1159, 7
        %v1161 = vsub.s32 4, %v1160
        %v1162 = vrot.slane %v924, %v1161
        %v1163 = vlaneseq
        %v1164 = vshrl.u32 %v1163, 7
        %v1165 = vsub.s32 5, %v1164
        %v1166 = vrot.slane %v924, %v1165
        %v1167 = vlaneseq
        %v1168 = vshrl.u32 %v1167, 7
        %v1169 = vsub.s32 6, %v1168
        %v1170 = vrot.slane %v924, %v1169
        %v1171 = vlaneseq
        %v1172 = vshrl.u32 %v1171, 7
        %v1173 = vsub.s32 7, %v1172
        %v1174 = vrot.slane %v924, %v1173
        %v1175 = vlaneseq
        %v1176 = vshrl.u32 %v1175, 7
        %v1177 = vsub.s32 0, %v1176
        %v1178 = vrot.slane %v925, %v1177
        %v1179 = vlaneseq
        %v1180 = vshrl.u32 %v1179, 7
        %v1181 = vsub.s32 1, %v1180
        %v1182 = vrot.slane %v925, %v1181
        %v1183 = vlaneseq
        %v1184 = vshrl.u32 %v1183, 7
        %v1185 = vsub.s32 2, %v1184
        %v1186 = vrot.slane %v925, %v1185
        %v1187 = vlaneseq
        %v1188 = vshrl.u32 %v1187, 7
        %v1189 = vsub.s32 3, %v1188
        %v1190 = vrot.slane %v925, %v1189
        %v1191 = vlaneseq
        %v1192 = vshrl.u32 %v1191, 7
        %v1193 = vsub.s32 4, %v1192
        %v1194 = vrot.slane %v925, %v1193
        %v1195 = vlaneseq
        %v1196 = vshrl.u32 %v1195, 7
        %v1197 = vsub.s32 5, %v1196
        %v1198 = vrot.slane %v925, %v1197
        %v1199 = vlaneseq
        %v1200 = vshrl.u32 %v1199, 7
        %v1201 = vsub.s32 6, %v1200
        %v1202 = vrot.slane %v925, %v1201
        %v1203 = vlaneseq
        %v1204 = vshrl.u32 %v1203, 7
        %v1205 = vsub.s32 7, %v1204
        %v1206 = vrot.slane %v925, %v1205
        %v1207 = vlaneseq
        %v1208 = vshrl.u32 %v1207, 7
        %v1209 = vsub.s32 0, %v1208
        %v1210 = vrot.slane %v926, %v1209
        %v1211 = vlaneseq
        %v1212 = vshrl.u32 %v1211, 7
        %v1213 = vsub.s32 1, %v1212
        %v1214 = vrot.slane %v926, %v1213
        %v1215 = vlaneseq
        %v1216 = vshrl.u32 %v1215, 7
        %v1217 = vsub.s32 2, %v1216
        %v1218 = vrot.slane %v926, %v1217
        %v1219 = vlaneseq
        %v1220 = vshrl.u32 %v1219, 7
        %v1221 = vsub.s32 3, %v1220
        %v1222 = vrot.slane %v926, %v1221
        %v1223 = vlaneseq
        %v1224 = vshrl.u32 %v1223, 7
        %v1225 = vsub.s32 4, %v1224
        %v1226 = vrot.slane %v926, %v1225
        %v1227 = vlaneseq
        %v1228 = vshrl.u32 %v1227, 7
        %v1229 = vsub.s32 5, %v1228
        %v1230 = vrot.slane %v926, %v1229
        %v1231 = vlaneseq
        %v1232 = vshrl.u32 %v1231, 7
        %v1233 = vsub.s32 6, %v1232
        %v1234 = vrot.slane %v926, %v1233
        %v1235 = vlaneseq
        %v1236 = vshrl.u32 %v1235, 7
        %v1237 = vsub.s32 7, %v1236
        %v1238 = vrot.slane %v926, %v1237
        %v1239 = vlaneseq
        %v1240 = vshrl.u32 %v1239, 7
        %v1241 = vsub.s32 0, %v1240
        %v1242 = vrot.slane %v927, %v1241
        %v1243 = vlaneseq
        %v1244 = vshrl.u32 %v1243, 7
        %v1245 = vsub.s32 1, %v1244
        %v1246 = vrot.slane %v927, %v1245
        %v1247 = vlaneseq
        %v1248 = vshrl.u32 %v1247, 7
        %v1249 = vsub.s32 2, %v1248
        %v1250 = vrot.slane %v927, %v1249
        %v1251 = vlaneseq
        %v1252 = vshrl.u32 %v1251, 7
        %v1253 = vsub.s32 3, %v1252
        %v1254 = vrot.slane %v927, %v1253
        %v1255 = vlaneseq
        %v1256 = vshrl.u32 %v1255, 7
        %v1257 = vsub.s32 4, %v1256
        %v1258 = vrot.slane %v927, %v1257
        %v1259 = vlaneseq
        %v1260 = vshrl.u32 %v1259, 7
        %v1261 = vsub.s32 5, %v1260
        %v1262 = vrot.slane %v927, %v1261
        %v1263 = vlaneseq
        %v1264 = vshrl.u32 %v1263, 7
        %v1265 = vsub.s32 6, %v1264
        %v1266 = vrot.slane %v927, %v1265
        %v1267 = vlaneseq
        %v1268 = vshrl.u32 %v1267, 7
        %v1269 = vsub.s32 7, %v1268
        %v1270 = vrot.slane %v927, %v1269
        %v1271 = vlaneseq
        %v1272 = vshrl.u32 %v1271, 7
        %v1273 = vsub.s32 0, %v1272
        %v1274 = vrot.slane %v928, %v1273
        %v1275 = vlaneseq
        %v1276 = vshrl.u32 %v1275, 7
        %v1277 = vsub.s32 1, %v1276
        %v1278 = vrot.slane %v928, %v1277
        %v1279 = vlaneseq
        %v1280 = vshrl.u32 %v1279, 7
        %v1281 = vsub.s32 2, %v1280
        %v1282 = vrot.slane %v928, %v1281
        %v1283 = vlaneseq
        %v1284 = vshrl.u32 %v1283, 7
        %v1285 = vsub.s32 3, %v1284
        %v1286 = vrot.slane %v928, %v1285
        %v1287 = vlaneseq
        %v1288 = vshrl.u32 %v1287, 7
        %v1289 = vsub.s32 4, %v1288
        %v1290 = vrot.slane %v928, %v1289
        %v1291 = vlaneseq
        %v1292 = vshrl.u32 %v1291, 7
        %v1293 = vsub.s32 5, %v1292
        %v1294 = vrot.slane %v928, %v1293
        %v1295 = vlaneseq
        %v1296 = vshrl.u32 %v1295, 7
        %v1297 = vsub.s32 6, %v1296
        %v1298 = vrot.slane %v928, %v1297
        %v1299 = vlaneseq
        %v1300 = vshrl.u32 %v1299, 7
        %v1301 = vsub.s32 7, %v1300
        %v1302 = vrot.slane %v928, %v1301
        %v1303 = vlaneseq
        %v1304 = vshrl.u32 %v1303, 7
        %v1305 = vsub.s32 0, %v1304
        %v1306 = vrot.slane %v929, %v1305
        %v1307 = vlaneseq
        %v1308 = vshrl.u32 %v1307, 7
        %v1309 = vsub.s32 1, %v1308
        %v1310 = vrot.slane %v929, %v1309
        %v1311 = vlaneseq
        %v1312 = vshrl.u32 %v1311, 7
        %v1313 = vsub.s32 2, %v1312
        %v1314 = vrot.slane %v929, %v1313
        %v1315 = vlaneseq
        %v1316 = vshrl.u32 %v1315, 7
        %v1317 = vsub.s32 3, %v1316
        %v1318 = vrot.slane %v929, %v1317
        %v1319 = vlaneseq
        %v1320 = vshrl.u32 %v1319, 7
        %v1321 = vsub.s32 4, %v1320
        %v1322 = vrot.slane %v929, %v1321
        %v1323 = vlaneseq
        %v1324 = vshrl.u32 %v1323, 7
        %v1325 = vsub.s32 5, %v1324
        %v1326 = vrot.slane %v929, %v1325
        %v1327 = vlaneseq
        %v1328 = vshrl.u32 %v1327, 7
        %v1329 = vsub.s32 6, %v1328
        %v1330 = vrot.slane %v929, %v1329
        %v1331 = vlaneseq
        %v1332 = vshrl.u32 %v1331, 7
        %v1333 = vsub.s32 7, %v1332
        %v1334 = vrot.slane %v929, %v1333
        %v1335 = vlaneseq
        %v1336 = vshrl.u32 %v1335, 7
        %v1337 = vsub.s32 0, %v1336
        %v1338 = vrot.slane %v930, %v1337
        %v1339 = vlaneseq
        %v1340 = vshrl.u32 %v1339, 7
        %v1341 = vsub.s32 1, %v1340
        %v1342 = vrot.slane %v930, %v1341
        %v1343 = vlaneseq
        %v1344 = vshrl.u32 %v1343, 7
        %v1345 = vsub.s32 2, %v1344
        %v1346 = vrot.slane %v930, %v1345
        %v1347 = vlaneseq
        %v1348 = vshrl.u32 %v1347, 7
        %v1349 = vsub.s32 3, %v1348
        %v1350 = vrot.slane %v930, %v1349
        %v1351 = vlaneseq
        %v1352 = vshrl.u32 %v1351, 7
        %v1353 = vsub.s32 4, %v1352
        %v1354 = vrot.slane %v930, %v1353
        %v1355 = vlaneseq
        %v1356 = vshrl.u32 %v1355, 7
        %v1357 = vsub.s32 5, %v1356
        %v1358 = vrot.slane %v930, %v1357
        %v1359 = vlaneseq
        %v1360 = vshrl.u32 %v1359, 7
        %v1361 = vsub.s32 6, %v1360
        %v1362 = vrot.slane %v930, %v1361
        %v1363 = vlaneseq
        %v1364 = vshrl.u32 %v1363, 7
        %v1365 = vsub.s32 7, %v1364
        %v1366 = vrot.slane %v930, %v1365
        %v1367 = vlaneseq
        %v1368 = vshrl.u32 %v1367, 7
        %v1369 = vsub.s32 0, %v1368
        %v1370 = vrot.slane %v931, %v1369
        %v1371 = vlaneseq
        %v1372 = vshrl.u32 %v1371, 7
        %v1373 = vsub.s32 1, %v1372
        %v1374 = vrot.slane %v931, %v1373
        %v1375 = vlaneseq
        %v1376 = vshrl.u32 %v1375, 7
        %v1377 = vsub.s32 2, %v1376
        %v1378 = vrot.slane %v931, %v1377
        %v1379 = vlaneseq
        %v1380 = vshrl.u32 %v1379, 7
        %v1381 = vsub.s32 3, %v1380
        %v1382 = vrot.slane %v931, %v1381
        %v1383 = vlaneseq
        %v1384 = vshrl.u32 %v1383, 7
        %v1385 = vsub.s32 4, %v1384
        %v1386 = vrot.slane %v931, %v1385
        %v1387 = vlaneseq
        %v1388 = vshrl.u32 %v1387, 7
        %v1389 = vsub.s32 5, %v1388
        %v1390 = vrot.slane %v931, %v1389
        %v1391 = vlaneseq
        %v1392 = vshrl.u32 %v1391, 7
        %v1393 = vsub.s32 6, %v1392
        %v1394 = vrot.slane %v931, %v1393
        %v1395 = vlaneseq
        %v1396 = vshrl.u32 %v1395, 7
        %v1397 = vsub.s32 7, %v1396
        %v1398 = vrot.slane %v931, %v1397
        %v1399 = vlaneseq
        %v1400 = vshrl.u32 %v1399, 7
        %v1401 = vsub.s32 0, %v1400
        %v1402 = vrot.slane %v932, %v1401
        %v1403 = vlaneseq
        %v1404 = vshrl.u32 %v1403, 7
        %v1405 = vsub.s32 1, %v1404
        %v1406 = vrot.slane %v932, %v1405
        %v1407 = vlaneseq
        %v1408 = vshrl.u32 %v1407, 7
        %v1409 = vsub.s32 2, %v1408
        %v1410 = vrot.slane %v932, %v1409
        %v1411 = vlaneseq
        %v1412 = vshrl.u32 %v1411, 7
        %v1413 = vsub.s32 3, %v1412
        %v1414 = vrot.slane %v932, %v1413
        %v1415 = vlaneseq
        %v1416 = vshrl.u32 %v1415, 7
        %v1417 = vsub.s32 4, %v1416
        %v1418 = vrot.slane %v932, %v1417
        %v1419 = vlaneseq
        %v1420 = vshrl.u32 %v1419, 7
        %v1421 = vsub.s32 5, %v1420
        %v1422 = vrot.slane %v932, %v1421
        %v1423 = vlaneseq
        %v1424 = vshrl.u32 %v1423, 7
        %v1425 = vsub.s32 6, %v1424
        %v1426 = vrot.slane %v932, %v1425
        %v1427 = vlaneseq
        %v1428 = vshrl.u32 %v1427, 7
        %v1429 = vsub.s32 7, %v1428
        %v1430 = vrot.slane %v932, %v1429
        %v1431 = vlaneseq
        %v1432 = vshrl.u32 %v1431, 7
        %v1433 = vsub.s32 0, %v1432
        %v1434 = vrot.slane %v933, %v1433
        %v1435 = vlaneseq
        %v1436 = vshrl.u32 %v1435, 7
        %v1437 = vsub.s32 1, %v1436
        %v1438 = vrot.slane %v933, %v1437
        %v1439 = vlaneseq
        %v1440 = vshrl.u32 %v1439, 7
        %v1441 = vsub.s32 2, %v1440
        %v1442 = vrot.slane %v933, %v1441
        %v1443 = vlaneseq
        %v1444 = vshrl.u32 %v1443, 7
        %v1445 = vsub.s32 3, %v1444
        %v1446 = vrot.slane %v933, %v1445
        %v1447 = vlaneseq
        %v1448 = vshrl.u32 %v1447, 7
        %v1449 = vsub.s32 4, %v1448
        %v1450 = vrot.slane %v933, %v1449
        %v1451 = vlaneseq
        %v1452 = vshrl.u32 %v1451, 7
        %v1453 = vsub.s32 5, %v1452
        %v1454 = vrot.slane %v933, %v1453
        %v1455 = vlaneseq
        %v1456 = vshrl.u32 %v1455, 7
        %v1457 = vsub.s32 6, %v1456
        %v1458 = vrot.slane %v933, %v1457
        %v1459 = vlaneseq
        %v1460 = vshrl.u32 %v1459, 7
        %v1461 = vsub.s32 7, %v1460
        %v1462 = vrot.slane %v933, %v1461
        %v1463 = vcombine.low %v954, %v958
        %v1464 = vcombine.low %v962, %v966
        %v1465 = vcombine.low %v970, %v974
        %v1466 = vcombine.low %v978, %v982
        %v1468 = vunpack.c.l.s4 1966171168
        %v1469 = vunpack.c.0.s8 %v1468
        %v1470 = vlaneseq
        %v1471 = vshrl.u32 %v1470, 7
        %v1472 = vsub.s32 %v1469, %v1471
        %v1473 = vrot.slane %v1463, %v1472
        %v1475 = vunpack.c.l.s4 1966171168
        %v1476 = vunpack.c.0.s8 %v1475
        %v1477 = vlaneseq
        %v1478 = vshrl.u32 %v1477, 7
        %v1479 = vsub.s32 %v1476, %v1478
        %v1480 = vrot.slane %v1464, %v1479
        %v1482 = vunpack.c.l.s4 1966171168
        %v1483 = vunpack.c.0.s8 %v1482
        %v1484 = vlaneseq
        %v1485 = vshrl.u32 %v1484, 7
        %v1486 = vsub.s32 %v1483, %v1485
        %v1487 = vrot.slane %v1465, %v1486
        %v1489 = vunpack.c.l.s4 1966171168
        %v1490 = vunpack.c.0.s8 %v1489
        %v1491 = vlaneseq
        %v1492 = vshrl.u32 %v1491, 7
        %v1493 = vsub.s32 %v1490, %v1492
        %v1494 = vrot.slane %v1466, %v1493
        %v1495 = vcombine.low %v1473, %v1480
        %v1496 = vcombine.low %v1487, %v1494
        %v1498 = vunpack.c.l.s4 1966171168
        %v1499 = vunpack.c.0.s8 %v1498
        %v1500 = vlaneseq
        %v1501 = vshrl.u32 %v1500, 7
        %v1502 = vsub.s32 %v1499, %v1501
        %v1503 = vrot.slane %v1495, %v1502
        %v1505 = vunpack.c.l.s4 1966171168
        %v1506 = vunpack.c.0.s8 %v1505
        %v1507 = vlaneseq
        %v1508 = vshrl.u32 %v1507, 7
        %v1509 = vsub.s32 %v1506, %v1508
        %v1510 = vrot.slane %v1496, %v1509
        %v1511 = vcombine.low %v1503, %v1510
        %v1512 = vcombine.low %v986, %v990
        %v1513 = vcombine.low %v994, %v998
        %v1514 = vcombine.low %v1002, %v1006
        %v1515 = vcombine.low %v1010, %v1014
        %v1517 = vunpack.c.l.s4 1966171168
        %v1518 = vunpack.c.0.s8 %v1517
        %v1519 = vlaneseq
        %v1520 = vshrl.u32 %v1519, 7
        %v1521 = vsub.s32 %v1518, %v1520
        %v1522 = vrot.slane %v1512, %v1521
        %v1524 = vunpack.c.l.s4 1966171168
        %v1525 = vunpack.c.0.s8 %v1524
        %v1526 = vlaneseq
        %v1527 = vshrl.u32 %v1526, 7
        %v1528 = vsub.s32 %v1525, %v1527
        %v1529 = vrot.slane %v1513, %v1528
        %v1531 = vunpack.c.l.s4 1966171168
        %v1532 = vunpack.c.0.s8 %v1531
        %v1533 = vlaneseq
        %v1534 = vshrl.u32 %v1533, 7
        %v1535 = vsub.s32 %v1532, %v1534
        %v1536 = vrot.slane %v1514, %v1535
        %v1538 = vunpack.c.l.s4 1966171168
        %v1539 = vunpack.c.0.s8 %v1538
        %v1540 = vlaneseq
        %v1541 = vshrl.u32 %v1540, 7
        %v1542 = vsub.s32 %v1539, %v1541
        %v1543 = vrot.slane %v1515, %v1542
        %v1544 = vcombine.low %v1522, %v1529
        %v1545 = vcombine.low %v1536, %v1543
        %v1547 = vunpack.c.l.s4 1966171168
        %v1548 = vunpack.c.0.s8 %v1547
        %v1549 = vlaneseq
        %v1550 = vshrl.u32 %v1549, 7
        %v1551 = vsub.s32 %v1548, %v1550
        %v1552 = vrot.slane %v1544, %v1551
        %v1554 = vunpack.c.l.s4 1966171168
        %v1555 = vunpack.c.0.s8 %v1554
        %v1556 = vlaneseq
        %v1557 = vshrl.u32 %v1556, 7
        %v1558 = vsub.s32 %v1555, %v1557
        %v1559 = vrot.slane %v1545, %v1558
        %v1560 = vcombine.low %v1552, %v1559
        %v1561 = vcombine.low %v1018, %v1022
        %v1562 = vcombine.low %v1026, %v1030
        %v1563 = vcombine.low %v1034, %v1038
        %v1564 = vcombine.low %v1042, %v1046
        %v1566 = vunpack.c.l.s4 1966171168
        %v1567 = vunpack.c.0.s8 %v1566
        %v1568 = vlaneseq
        %v1569 = vshrl.u32 %v1568, 7
        %v1570 = vsub.s32 %v1567, %v1569
        %v1571 = vrot.slane %v1561, %v1570
        %v1573 = vunpack.c.l.s4 1966171168
        %v1574 = vunpack.c.0.s8 %v1573
        %v1575 = vlaneseq
        %v1576 = vshrl.u32 %v1575, 7
        %v1577 = vsub.s32 %v1574, %v1576
        %v1578 = vrot.slane %v1562, %v1577
        %v1580 = vunpack.c.l.s4 1966171168
        %v1581 = vunpack.c.0.s8 %v1580
        %v1582 = vlaneseq
        %v1583 = vshrl.u32 %v1582, 7
        %v1584 = vsub.s32 %v1581, %v1583
        %v1585 = vrot.slane %v1563, %v1584
        %v1587 = vunpack.c.l.s4 1966171168
        %v1588 = vunpack.c.0.s8 %v1587
        %v1589 = vlaneseq
        %v1590 = vshrl.u32 %v1589, 7
        %v1591 = vsub.s32 %v1588, %v1590
        %v1592 = vrot.slane %v1564, %v1591
        %v1593 = vcombine.low %v1571, %v1578
        %v1594 = vcombine.low %v1585, %v1592
        %v1596 = vunpack.c.l.s4 1966171168
        %v1597 = vunpack.c.0.s8 %v1596
        %v1598 = vlaneseq
        %v1599 = vshrl.u32 %v1598, 7
        %v1600 = vsub.s32 %v1597, %v1599
        %v1601 = vrot.slane %v1593, %v1600
        %v1603 = vunpack.c.l.s4 1966171168
        %v1604 = vunpack.c.0.s8 %v1603
        %v1605 = vlaneseq
        %v1606 = vshrl.u32 %v1605, 7
        %v1607 = vsub.s32 %v1604, %v1606
        %v1608 = vrot.slane %v1594, %v1607
        %v1609 = vcombine.low %v1601, %v1608
        %v1610 = vcombine.low %v1050, %v1054
        %v1611 = vcombine.low %v1058, %v1062
        %v1612 = vcombine.low %v1066, %v1070
        %v1613 = vcombine.low %v1074, %v1078
        %v1615 = vunpack.c.l.s4 1966171168
        %v1616 = vunpack.c.0.s8 %v1615
        %v1617 = vlaneseq
        %v1618 = vshrl.u32 %v1617, 7
        %v1619 = vsub.s32 %v1616, %v1618
        %v1620 = vrot.slane %v1610, %v1619
        %v1622 = vunpack.c.l.s4 1966171168
        %v1623 = vunpack.c.0.s8 %v1622
        %v1624 = vlaneseq
        %v1625 = vshrl.u32 %v1624, 7
        %v1626 = vsub.s32 %v1623, %v1625
        %v1627 = vrot.slane %v1611, %v1626
        %v1629 = vunpack.c.l.s4 1966171168
        %v1630 = vunpack.c.0.s8 %v1629
        %v1631 = vlaneseq
        %v1632 = vshrl.u32 %v1631, 7
        %v1633 = vsub.s32 %v1630, %v1632
        %v1634 = vrot.slane %v1612, %v1633
        %v1636 = vunpack.c.l.s4 1966171168
        %v1637 = vunpack.c.0.s8 %v1636
        %v1638 = vlaneseq
        %v1639 = vshrl.u32 %v1638, 7
        %v1640 = vsub.s32 %v1637, %v1639
        %v1641 = vrot.slane %v1613, %v1640
        %v1642 = vcombine.low %v1620, %v1627
        %v1643 = vcombine.low %v1634, %v1641
        %v1645 = vunpack.c.l.s4 1966171168
        %v1646 = vunpack.c.0.s8 %v1645
        %v1647 = vlaneseq
        %v1648 = vshrl.u32 %v1647, 7
        %v1649 = vsub.s32 %v1646, %v1648
        %v1650 = vrot.slane %v1642, %v1649
        %v1652 = vunpack.c.l.s4 1966171168
        %v1653 = vunpack.c.0.s8 %v1652
        %v1654 = vlaneseq
        %v1655 = vshrl.u32 %v1654, 7
        %v1656 = vsub.s32 %v1653, %v1655
        %v1657 = vrot.slane %v1643, %v1656
        %v1658 = vcombine.low %v1650, %v1657
        %v1659 = vcombine.low %v1082, %v1086
        %v1660 = vcombine.low %v1090, %v1094
        %v1661 = vcombine.low %v1098, %v1102
        %v1662 = vcombine.low %v1106, %v1110
        %v1664 = vunpack.c.l.s4 1966171168
        %v1665 = vunpack.c.0.s8 %v1664
        %v1666 = vlaneseq
        %v1667 = vshrl.u32 %v1666, 7
        %v1668 = vsub.s32 %v1665, %v1667
        %v1669 = vrot.slane %v1659, %v1668
        %v1671 = vunpack.c.l.s4 1966171168
        %v1672 = vunpack.c.0.s8 %v1671
        %v1673 = vlaneseq
        %v1674 = vshrl.u32 %v1673, 7
        %v1675 = vsub.s32 %v1672, %v1674
        %v1676 = vrot.slane %v1660, %v1675
        %v1678 = vunpack.c.l.s4 1966171168
        %v1679 = vunpack.c.0.s8 %v1678
        %v1680 = vlaneseq
        %v1681 = vshrl.u32 %v1680, 7
        %v1682 = vsub.s32 %v1679, %v1681
        %v1683 = vrot.slane %v1661, %v1682
        %v1685 = vunpack.c.l.s4 1966171168
        %v1686 = vunpack.c.0.s8 %v1685
        %v1687 = vlaneseq
        %v1688 = vshrl.u32 %v1687, 7
        %v1689 = vsub.s32 %v1686, %v1688
        %v1690 = vrot.slane %v1662, %v1689
        %v1691 = vcombine.low %v1669, %v1676
        %v1692 = vcombine.low %v1683, %v1690
        %v1694 = vunpack.c.l.s4 1966171168
        %v1695 = vunpack.c.0.s8 %v1694
        %v1696 = vlaneseq
        %v1697 = vshrl.u32 %v1696, 7
        %v1698 = vsub.s32 %v1695, %v1697
        %v1699 = vrot.slane %v1691, %v1698
        %v1701 = vunpack.c.l.s4 1966171168
        %v1702 = vunpack.c.0.s8 %v1701
        %v1703 = vlaneseq
        %v1704 = vshrl.u32 %v1703, 7
        %v1705 = vsub.s32 %v1702, %v1704
        %v1706 = vrot.slane %v1692, %v1705
        %v1707 = vcombine.low %v1699, %v1706
        %v1708 = vcombine.low %v1114, %v1118
        %v1709 = vcombine.low %v1122, %v1126
        %v1710 = vcombine.low %v1130, %v1134
        %v1711 = vcombine.low %v1138, %v1142
        %v1713 = vunpack.c.l.s4 1966171168
        %v1714 = vunpack.c.0.s8 %v1713
        %v1715 = vlaneseq
        %v1716 = vshrl.u32 %v1715, 7
        %v1717 = vsub.s32 %v1714, %v1716
        %v1718 = vrot.slane %v1708, %v1717
        %v1720 = vunpack.c.l.s4 1966171168
        %v1721 = vunpack.c.0.s8 %v1720
        %v1722 = vlaneseq
        %v1723 = vshrl.u32 %v1722, 7
        %v1724 = vsub.s32 %v1721, %v1723
        %v1725 = vrot.slane %v1709, %v1724
        %v1727 = vunpack.c.l.s4 1966171168
        %v1728 = vunpack.c.0.s8 %v1727
        %v1729 = vlaneseq
        %v1730 = vshrl.u32 %v1729, 7
        %v1731 = vsub.s32 %v1728, %v1730
        %v1732 = vrot.slane %v1710, %v1731
        %v1734 = vunpack.c.l.s4 1966171168
        %v1735 = vunpack.c.0.s8 %v1734
        %v1736 = vlaneseq
        %v1737 = vshrl.u32 %v1736, 7
        %v1738 = vsub.s32 %v1735, %v1737
        %v1739 = vrot.slane %v1711, %v1738
        %v1740 = vcombine.low %v1718, %v1725
        %v1741 = vcombine.low %v1732, %v1739
        %v1743 = vunpack.c.l.s4 1966171168
        %v1744 = vunpack.c.0.s8 %v1743
        %v1745 = vlaneseq
        %v1746 = vshrl.u32 %v1745, 7
        %v1747 = vsub.s32 %v1744, %v1746
        %v1748 = vrot.slane %v1740, %v1747
        %v1750 = vunpack.c.l.s4 1966171168
        %v1751 = vunpack.c.0.s8 %v1750
        %v1752 = vlaneseq
        %v1753 = vshrl.u32 %v1752, 7
        %v1754 = vsub.s32 %v1751, %v1753
        %v1755 = vrot.slane %v1741, %v1754
        %v1756 = vcombine.low %v1748, %v1755
        %v1757 = vcombine.low %v1146, %v1150
        %v1758 = vcombine.low %v1154, %v1158
        %v1759 = vcombine.low %v1162, %v1166
        %v1760 = vcombine.low %v1170, %v1174
        %v1762 = vunpack.c.l.s4 1966171168
        %v1763 = vunpack.c.0.s8 %v1762
        %v1764 = vlaneseq
        %v1765 = vshrl.u32 %v1764, 7
        %v1766 = vsub.s32 %v1763, %v1765
        %v1767 = vrot.slane %v1757, %v1766
        %v1769 = vunpack.c.l.s4 1966171168
        %v1770 = vunpack.c.0.s8 %v1769
        %v1771 = vlaneseq
        %v1772 = vshrl.u32 %v1771, 7
        %v1773 = vsub.s32 %v1770, %v1772
        %v1774 = vrot.slane %v1758, %v1773
        %v1776 = vunpack.c.l.s4 1966171168
        %v1777 = vunpack.c.0.s8 %v1776
        %v1778 = vlaneseq
        %v1779 = vshrl.u32 %v1778, 7
        %v1780 = vsub.s32 %v1777, %v1779
        %v1781 = vrot.slane %v1759, %v1780
        %v1783 = vunpack.c.l.s4 1966171168
        %v1784 = vunpack.c.0.s8 %v1783
        %v1785 = vlaneseq
        %v1786 = vshrl.u32 %v1785, 7
        %v1787 = vsub.s32 %v1784, %v1786
        %v1788 = vrot.slane %v1760, %v1787
        %v1789 = vcombine.low %v1767, %v1774
        %v1790 = vcombine.low %v1781, %v1788
        %v1792 = vunpack.c.l.s4 1966171168
        %v1793 = vunpack.c.0.s8 %v1792
        %v1794 = vlaneseq
        %v1795 = vshrl.u32 %v1794, 7
        %v1796 = vsub.s32 %v1793, %v1795
        %v1797 = vrot.slane %v1789, %v1796
        %v1799 = vunpack.c.l.s4 1966171168
        %v1800 = vunpack.c.0.s8 %v1799
        %v1801 = vlaneseq
        %v1802 = vshrl.u32 %v1801, 7
        %v1803 = vsub.s32 %v1800, %v1802
        %v1804 = vrot.slane %v1790, %v1803
        %v1805 = vcombine.low %v1797, %v1804
        %v1806 = vcombine.low %v1178, %v1182
        %v1807 = vcombine.low %v1186, %v1190
        %v1808 = vcombine.low %v1194, %v1198
        %v1809 = vcombine.low %v1202, %v1206
        %v1811 = vunpack.c.l.s4 1966171168
        %v1812 = vunpack.c.0.s8 %v1811
        %v1813 = vlaneseq
        %v1814 = vshrl.u32 %v1813, 7
        %v1815 = vsub.s32 %v1812, %v1814
        %v1816 = vrot.slane %v1806, %v1815
        %v1818 = vunpack.c.l.s4 1966171168
        %v1819 = vunpack.c.0.s8 %v1818
        %v1820 = vlaneseq
        %v1821 = vshrl.u32 %v1820, 7
        %v1822 = vsub.s32 %v1819, %v1821
        %v1823 = vrot.slane %v1807, %v1822
        %v1825 = vunpack.c.l.s4 1966171168
        %v1826 = vunpack.c.0.s8 %v1825
        %v1827 = vlaneseq
        %v1828 = vshrl.u32 %v1827, 7
        %v1829 = vsub.s32 %v1826, %v1828
        %v1830 = vrot.slane %v1808, %v1829
        %v1832 = vunpack.c.l.s4 1966171168
        %v1833 = vunpack.c.0.s8 %v1832
        %v1834 = vlaneseq
        %v1835 = vshrl.u32 %v1834, 7
        %v1836 = vsub.s32 %v1833, %v1835
        %v1837 = vrot.slane %v1809, %v1836
        %v1838 = vcombine.low %v1816, %v1823
        %v1839 = vcombine.low %v1830, %v1837
        %v1841 = vunpack.c.l.s4 1966171168
        %v1842 = vunpack.c.0.s8 %v1841
        %v1843 = vlaneseq
        %v1844 = vshrl.u32 %v1843, 7
        %v1845 = vsub.s32 %v1842, %v1844
        %v1846 = vrot.slane %v1838, %v1845
        %v1848 = vunpack.c.l.s4 1966171168
        %v1849 = vunpack.c.0.s8 %v1848
        %v1850 = vlaneseq
        %v1851 = vshrl.u32 %v1850, 7
        %v1852 = vsub.s32 %v1849, %v1851
        %v1853 = vrot.slane %v1839, %v1852
        %v1854 = vcombine.low %v1846, %v1853
        %v1855 = vcombine.low %v1210, %v1214
        %v1856 = vcombine.low %v1218, %v1222
        %v1857 = vcombine.low %v1226, %v1230
        %v1858 = vcombine.low %v1234, %v1238
        %v1860 = vunpack.c.l.s4 1966171168
        %v1861 = vunpack.c.0.s8 %v1860
        %v1862 = vlaneseq
        %v1863 = vshrl.u32 %v1862, 7
        %v1864 = vsub.s32 %v1861, %v1863
        %v1865 = vrot.slane %v1855, %v1864
        %v1867 = vunpack.c.l.s4 1966171168
        %v1868 = vunpack.c.0.s8 %v1867
        %v1869 = vlaneseq
        %v1870 = vshrl.u32 %v1869, 7
        %v1871 = vsub.s32 %v1868, %v1870
        %v1872 = vrot.slane %v1856, %v1871
        %v1874 = vunpack.c.l.s4 1966171168
        %v1875 = vunpack.c.0.s8 %v1874
        %v1876 = vlaneseq
        %v1877 = vshrl.u32 %v1876, 7
        %v1878 = vsub.s32 %v1875, %v1877
        %v1879 = vrot.slane %v1857, %v1878
        %v1881 = vunpack.c.l.s4 1966171168
        %v1882 = vunpack.c.0.s8 %v1881
        %v1883 = vlaneseq
        %v1884 = vshrl.u32 %v1883, 7
        %v1885 = vsub.s32 %v1882, %v1884
        %v1886 = vrot.slane %v1858, %v1885
        %v1887 = vcombine.low %v1865, %v1872
        %v1888 = vcombine.low %v1879, %v1886
        %v1890 = vunpack.c.l.s4 1966171168
        %v1891 = vunpack.c.0.s8 %v1890
        %v1892 = vlaneseq
        %v1893 = vshrl.u32 %v1892, 7
        %v1894 = vsub.s32 %v1891, %v1893
        %v1895 = vrot.slane %v1887, %v1894
        %v1897 = vunpack.c.l.s4 1966171168
        %v1898 = vunpack.c.0.s8 %v1897
        %v1899 = vlaneseq
        %v1900 = vshrl.u32 %v1899, 7
        %v1901 = vsub.s32 %v1898, %v1900
        %v1902 = vrot.slane %v1888, %v1901
        %v1903 = vcombine.low %v1895, %v1902
        %v1904 = vcombine.low %v1242, %v1246
        %v1905 = vcombine.low %v1250, %v1254
        %v1906 = vcombine.low %v1258, %v1262
        %v1907 = vcombine.low %v1266, %v1270
        %v1909 = vunpack.c.l.s4 1966171168
        %v1910 = vunpack.c.0.s8 %v1909
        %v1911 = vlaneseq
        %v1912 = vshrl.u32 %v1911, 7
        %v1913 = vsub.s32 %v1910, %v1912
        %v1914 = vrot.slane %v1904, %v1913
        %v1916 = vunpack.c.l.s4 1966171168
        %v1917 = vunpack.c.0.s8 %v1916
        %v1918 = vlaneseq
        %v1919 = vshrl.u32 %v1918, 7
        %v1920 = vsub.s32 %v1917, %v1919
        %v1921 = vrot.slane %v1905, %v1920
        %v1923 = vunpack.c.l.s4 1966171168
        %v1924 = vunpack.c.0.s8 %v1923
        %v1925 = vlaneseq
        %v1926 = vshrl.u32 %v1925, 7
        %v1927 = vsub.s32 %v1924, %v1926
        %v1928 = vrot.slane %v1906, %v1927
        %v1930 = vunpack.c.l.s4 1966171168
        %v1931 = vunpack.c.0.s8 %v1930
        %v1932 = vlaneseq
        %v1933 = vshrl.u32 %v1932, 7
        %v1934 = vsub.s32 %v1931, %v1933
        %v1935 = vrot.slane %v1907, %v1934
        %v1936 = vcombine.low %v1914, %v1921
        %v1937 = vcombine.low %v1928, %v1935
        %v1939 = vunpack.c.l.s4 1966171168
        %v1940 = vunpack.c.0.s8 %v1939
        %v1941 = vlaneseq
        %v1942 = vshrl.u32 %v1941, 7
        %v1943 = vsub.s32 %v1940, %v1942
        %v1944 = vrot.slane %v1936, %v1943
        %v1946 = vunpack.c.l.s4 1966171168
        %v1947 = vunpack.c.0.s8 %v1946
        %v1948 = vlaneseq
        %v1949 = vshrl.u32 %v1948, 7
        %v1950 = vsub.s32 %v1947, %v1949
        %v1951 = vrot.slane %v1937, %v1950
        %v1952 = vcombine.low %v1944, %v1951
        %v1953 = vcombine.low %v1274, %v1278
        %v1954 = vcombine.low %v1282, %v1286
        %v1955 = vcombine.low %v1290, %v1294
        %v1956 = vcombine.low %v1298, %v1302
        %v1958 = vunpack.c.l.s4 1966171168
        %v1959 = vunpack.c.0.s8 %v1958
        %v1960 = vlaneseq
        %v1961 = vshrl.u32 %v1960, 7
        %v1962 = vsub.s32 %v1959, %v1961
        %v1963 = vrot.slane %v1953, %v1962
        %v1965 = vunpack.c.l.s4 1966171168
        %v1966 = vunpack.c.0.s8 %v1965
        %v1967 = vlaneseq
        %v1968 = vshrl.u32 %v1967, 7
        %v1969 = vsub.s32 %v1966, %v1968
        %v1970 = vrot.slane %v1954, %v1969
        %v1972 = vunpack.c.l.s4 1966171168
        %v1973 = vunpack.c.0.s8 %v1972
        %v1974 = vlaneseq
        %v1975 = vshrl.u32 %v1974, 7
        %v1976 = vsub.s32 %v1973, %v1975
        %v1977 = vrot.slane %v1955, %v1976
        %v1979 = vunpack.c.l.s4 1966171168
        %v1980 = vunpack.c.0.s8 %v1979
        %v1981 = vlaneseq
        %v1982 = vshrl.u32 %v1981, 7
        %v1983 = vsub.s32 %v1980, %v1982
        %v1984 = vrot.slane %v1956, %v1983
        %v1985 = vcombine.low %v1963, %v1970
        %v1986 = vcombine.low %v1977, %v1984
        %v1988 = vunpack.c.l.s4 1966171168
        %v1989 = vunpack.c.0.s8 %v1988
        %v1990 = vlaneseq
        %v1991 = vshrl.u32 %v1990, 7
        %v1992 = vsub.s32 %v1989, %v1991
        %v1993 = vrot.slane %v1985, %v1992
        %v1995 = vunpack.c.l.s4 1966171168
        %v1996 = vunpack.c.0.s8 %v1995
        %v1997 = vlaneseq
        %v1998 = vshrl.u32 %v1997, 7
        %v1999 = vsub.s32 %v1996, %v1998
        %v2000 = vrot.slane %v1986, %v1999
        %v2001 = vcombine.low %v1993, %v2000
        %v2002 = vcombine.low %v1306, %v1310
        %v2003 = vcombine.low %v1314, %v1318
        %v2004 = vcombine.low %v1322, %v1326
        %v2005 = vcombine.low %v1330, %v1334
        %v2007 = vunpack.c.l.s4 1966171168
        %v2008 = vunpack.c.0.s8 %v2007
        %v2009 = vlaneseq
        %v2010 = vshrl.u32 %v2009, 7
        %v2011 = vsub.s32 %v2008, %v2010
        %v2012 = vrot.slane %v2002, %v2011
        %v2014 = vunpack.c.l.s4 1966171168
        %v2015 = vunpack.c.0.s8 %v2014
        %v2016 = vlaneseq
        %v2017 = vshrl.u32 %v2016, 7
        %v2018 = vsub.s32 %v2015, %v2017
        %v2019 = vrot.slane %v2003, %v2018
        %v2021 = vunpack.c.l.s4 1966171168
        %v2022 = vunpack.c.0.s8 %v2021
        %v2023 = vlaneseq
        %v2024 = vshrl.u32 %v2023, 7
        %v2025 = vsub.s32 %v2022, %v2024
        %v2026 = vrot.slane %v2004, %v2025
        %v2028 = vunpack.c.l.s4 1966171168
        %v2029 = vunpack.c.0.s8 %v2028
        %v2030 = vlaneseq
        %v2031 = vshrl.u32 %v2030, 7
        %v2032 = vsub.s32 %v2029, %v2031
        %v2033 = vrot.slane %v2005, %v2032
        %v2034 = vcombine.low %v2012, %v2019
        %v2035 = vcombine.low %v2026, %v2033
        %v2037 = vunpack.c.l.s4 1966171168
        %v2038 = vunpack.c.0.s8 %v2037
        %v2039 = vlaneseq
        %v2040 = vshrl.u32 %v2039, 7
        %v2041 = vsub.s32 %v2038, %v2040
        %v2042 = vrot.slane %v2034, %v2041
        %v2044 = vunpack.c.l.s4 1966171168
        %v2045 = vunpack.c.0.s8 %v2044
        %v2046 = vlaneseq
        %v2047 = vshrl.u32 %v2046, 7
        %v2048 = vsub.s32 %v2045, %v2047
        %v2049 = vrot.slane %v2035, %v2048
        %v2050 = vcombine.low %v2042, %v2049
        %v2051 = vcombine.low %v1338, %v1342
        %v2052 = vcombine.low %v1346, %v1350
        %v2053 = vcombine.low %v1354, %v1358
        %v2054 = vcombine.low %v1362, %v1366
        %v2056 = vunpack.c.l.s4 1966171168
        %v2057 = vunpack.c.0.s8 %v2056
        %v2058 = vlaneseq
        %v2059 = vshrl.u32 %v2058, 7
        %v2060 = vsub.s32 %v2057, %v2059
        %v2061 = vrot.slane %v2051, %v2060
        %v2063 = vunpack.c.l.s4 1966171168
        %v2064 = vunpack.c.0.s8 %v2063
        %v2065 = vlaneseq
        %v2066 = vshrl.u32 %v2065, 7
        %v2067 = vsub.s32 %v2064, %v2066
        %v2068 = vrot.slane %v2052, %v2067
        %v2070 = vunpack.c.l.s4 1966171168
        %v2071 = vunpack.c.0.s8 %v2070
        %v2072 = vlaneseq
        %v2073 = vshrl.u32 %v2072, 7
        %v2074 = vsub.s32 %v2071, %v2073
        %v2075 = vrot.slane %v2053, %v2074
        %v2077 = vunpack.c.l.s4 1966171168
        %v2078 = vunpack.c.0.s8 %v2077
        %v2079 = vlaneseq
        %v2080 = vshrl.u32 %v2079, 7
        %v2081 = vsub.s32 %v2078, %v2080
        %v2082 = vrot.slane %v2054, %v2081
        %v2083 = vcombine.low %v2061, %v2068
        %v2084 = vcombine.low %v2075, %v2082
        %v2086 = vunpack.c.l.s4 1966171168
        %v2087 = vunpack.c.0.s8 %v2086
        %v2088 = vlaneseq
        %v2089 = vshrl.u32 %v2088, 7
        %v2090 = vsub.s32 %v2087, %v2089
        %v2091 = vrot.slane %v2083, %v2090
        %v2093 = vunpack.c.l.s4 1966171168
        %v2094 = vunpack.c.0.s8 %v2093
        %v2095 = vlaneseq
        %v2096 = vshrl.u32 %v2095, 7
        %v2097 = vsub.s32 %v2094, %v2096
        %v2098 = vrot.slane %v2084, %v2097
        %v2099 = vcombine.low %v2091, %v2098
        %v2100 = vcombine.low %v1370, %v1374
        %v2101 = vcombine.low %v1378, %v1382
        %v2102 = vcombine.low %v1386, %v1390
        %v2103 = vcombine.low %v1394, %v1398
        %v2105 = vunpack.c.l.s4 1966171168
        %v2106 = vunpack.c.0.s8 %v2105
        %v2107 = vlaneseq
        %v2108 = vshrl.u32 %v2107, 7
        %v2109 = vsub.s32 %v2106, %v2108
        %v2110 = vrot.slane %v2100, %v2109
        %v2112 = vunpack.c.l.s4 1966171168
        %v2113 = vunpack.c.0.s8 %v2112
        %v2114 = vlaneseq
        %v2115 = vshrl.u32 %v2114, 7
        %v2116 = vsub.s32 %v2113, %v2115
        %v2117 = vrot.slane %v2101, %v2116
        %v2119 = vunpack.c.l.s4 1966171168
        %v2120 = vunpack.c.0.s8 %v2119
        %v2121 = vlaneseq
        %v2122 = vshrl.u32 %v2121, 7
        %v2123 = vsub.s32 %v2120, %v2122
        %v2124 = vrot.slane %v2102, %v2123
        %v2126 = vunpack.c.l.s4 1966171168
        %v2127 = vunpack.c.0.s8 %v2126
        %v2128 = vlaneseq
        %v2129 = vshrl.u32 %v2128, 7
        %v2130 = vsub.s32 %v2127, %v2129
        %v2131 = vrot.slane %v2103, %v2130
        %v2132 = vcombine.low %v2110, %v2117
        %v2133 = vcombine.low %v2124, %v2131
        %v2135 = vunpack.c.l.s4 1966171168
        %v2136 = vunpack.c.0.s8 %v2135
        %v2137 = vlaneseq
        %v2138 = vshrl.u32 %v2137, 7
        %v2139 = vsub.s32 %v2136, %v2138
        %v2140 = vrot.slane %v2132, %v2139
        %v2142 = vunpack.c.l.s4 1966171168
        %v2143 = vunpack.c.0.s8 %v2142
        %v2144 = vlaneseq
        %v2145 = vshrl.u32 %v2144, 7
        %v2146 = vsub.s32 %v2143, %v2145
        %v2147 = vrot.slane %v2133, %v2146
        %v2148 = vcombine.low %v2140, %v2147
        %v2149 = vcombine.low %v1402, %v1406
        %v2150 = vcombine.low %v1410, %v1414
        %v2151 = vcombine.low %v1418, %v1422
        %v2152 = vcombine.low %v1426, %v1430
        %v2154 = vunpack.c.l.s4 1966171168
        %v2155 = vunpack.c.0.s8 %v2154
        %v2156 = vlaneseq
        %v2157 = vshrl.u32 %v2156, 7
        %v2158 = vsub.s32 %v2155, %v2157
        %v2159 = vrot.slane %v2149, %v2158
        %v2161 = vunpack.c.l.s4 1966171168
        %v2162 = vunpack.c.0.s8 %v2161
        %v2163 = vlaneseq
        %v2164 = vshrl.u32 %v2163, 7
        %v2165 = vsub.s32 %v2162, %v2164
        %v2166 = vrot.slane %v2150, %v2165
        %v2168 = vunpack.c.l.s4 1966171168
        %v2169 = vunpack.c.0.s8 %v2168
        %v2170 = vlaneseq
        %v2171 = vshrl.u32 %v2170, 7
        %v2172 = vsub.s32 %v2169, %v2171
        %v2173 = vrot.slane %v2151, %v2172
        %v2175 = vunpack.c.l.s4 1966171168
        %v2176 = vunpack.c.0.s8 %v2175
        %v2177 = vlaneseq
        %v2178 = vshrl.u32 %v2177, 7
        %v2179 = vsub.s32 %v2176, %v2178
        %v2180 = vrot.slane %v2152, %v2179
        %v2181 = vcombine.low %v2159, %v2166
        %v2182 = vcombine.low %v2173, %v2180
        %v2184 = vunpack.c.l.s4 1966171168
        %v2185 = vunpack.c.0.s8 %v2184
        %v2186 = vlaneseq
        %v2187 = vshrl.u32 %v2186, 7
        %v2188 = vsub.s32 %v2185, %v2187
        %v2189 = vrot.slane %v2181, %v2188
        %v2191 = vunpack.c.l.s4 1966171168
        %v2192 = vunpack.c.0.s8 %v2191
        %v2193 = vlaneseq
        %v2194 = vshrl.u32 %v2193, 7
        %v2195 = vsub.s32 %v2192, %v2194
        %v2196 = vrot.slane %v2182, %v2195
        %v2197 = vcombine.low %v2189, %v2196
        %v2198 = vcombine.low %v1434, %v1438
        %v2199 = vcombine.low %v1442, %v1446
        %v2200 = vcombine.low %v1450, %v1454
        %v2201 = vcombine.low %v1458, %v1462
        %v2203 = vunpack.c.l.s4 1966171168
        %v2204 = vunpack.c.0.s8 %v2203
        %v2205 = vlaneseq
        %v2206 = vshrl.u32 %v2205, 7
        %v2207 = vsub.s32 %v2204, %v2206
        %v2208 = vrot.slane %v2198, %v2207
        %v2210 = vunpack.c.l.s4 1966171168
        %v2211 = vunpack.c.0.s8 %v2210
        %v2212 = vlaneseq
        %v2213 = vshrl.u32 %v2212, 7
        %v2214 = vsub.s32 %v2211, %v2213
        %v2215 = vrot.slane %v2199, %v2214
        %v2217 = vunpack.c.l.s4 1966171168
        %v2218 = vunpack.c.0.s8 %v2217
        %v2219 = vlaneseq
        %v2220 = vshrl.u32 %v2219, 7
        %v2221 = vsub.s32 %v2218, %v2220
        %v2222 = vrot.slane %v2200, %v2221
        %v2224 = vunpack.c.l.s4 1966171168
        %v2225 = vunpack.c.0.s8 %v2224
        %v2226 = vlaneseq
        %v2227 = vshrl.u32 %v2226, 7
        %v2228 = vsub.s32 %v2225, %v2227
        %v2229 = vrot.slane %v2201, %v2228
        %v2230 = vcombine.low %v2208, %v2215
        %v2231 = vcombine.low %v2222, %v2229
        %v2233 = vunpack.c.l.s4 1966171168
        %v2234 = vunpack.c.0.s8 %v2233
        %v2235 = vlaneseq
        %v2236 = vshrl.u32 %v2235, 7
        %v2237 = vsub.s32 %v2234, %v2236
        %v2238 = vrot.slane %v2230, %v2237
        %v2240 = vunpack.c.l.s4 1966171168
        %v2241 = vunpack.c.0.s8 %v2240
        %v2242 = vlaneseq
        %v2243 = vshrl.u32 %v2242, 7
        %v2244 = vsub.s32 %v2241, %v2243
        %v2245 = vrot.slane %v2231, %v2244
        %v2246 = vcombine.low %v2238, %v2245
        %2247 = vset.pattern.permute.xlu0 0
        %2248 = vperm.xlu0 %2247, %v1511
        %v2249 = vpop.permute.xlu0 %2248
        %2250 = vset.pattern.permute.xlu0 0
        %2251 = vperm.xlu0 %2250, %v1560
        %v2252 = vpop.permute.xlu0 %2251
        %2253 = vset.pattern.permute.xlu0 0
        %2254 = vperm.xlu0 %2253, %v1609
        %v2255 = vpop.permute.xlu0 %2254
        %2256 = vset.pattern.permute.xlu0 0
        %2257 = vperm.xlu0 %2256, %v1658
        %v2258 = vpop.permute.xlu0 %2257
        %2259 = vset.pattern.permute.xlu0 0
        %2260 = vperm.xlu0 %2259, %v1707
        %v2261 = vpop.permute.xlu0 %2260
        %2262 = vset.pattern.permute.xlu0 0
        %2263 = vperm.xlu0 %2262, %v1756
        %v2264 = vpop.permute.xlu0 %2263
        %2265 = vset.pattern.permute.xlu0 0
        %2266 = vperm.xlu0 %2265, %v1805
        %v2267 = vpop.permute.xlu0 %2266
        %2268 = vset.pattern.permute.xlu0 0
        %2269 = vperm.xlu0 %2268, %v1854
        %v2270 = vpop.permute.xlu0 %2269
        %2271 = vset.pattern.permute.xlu0 0
        %2272 = vperm.xlu0 %2271, %v1903
        %v2273 = vpop.permute.xlu0 %2272
        %2274 = vset.pattern.permute.xlu0 0
        %2275 = vperm.xlu0 %2274, %v1952
        %v2276 = vpop.permute.xlu0 %2275
        %2277 = vset.pattern.permute.xlu0 0
        %2278 = vperm.xlu0 %2277, %v2001
        %v2279 = vpop.permute.xlu0 %2278
        %2280 = vset.pattern.permute.xlu0 0
        %2281 = vperm.xlu0 %2280, %v2050
        %v2282 = vpop.permute.xlu0 %2281
        %2283 = vset.pattern.permute.xlu0 0
        %2284 = vperm.xlu0 %2283, %v2099
        %v2285 = vpop.permute.xlu0 %2284
        %2286 = vset.pattern.permute.xlu0 0
        %2287 = vperm.xlu0 %2286, %v2148
        %v2288 = vpop.permute.xlu0 %2287
        %2289 = vset.pattern.permute.xlu0 0
        %2290 = vperm.xlu0 %2289, %v2197
        %v2291 = vpop.permute.xlu0 %2290
        %2292 = vset.pattern.permute.xlu0 0
        %2293 = vperm.xlu0 %2292, %v2246
        %v2294 = vpop.permute.xlu0 %2293
        %v2295 = vlaneseq
        %v2296 = vand.u32 %v2295, 127
        %v2297 = vlaneseq
        %v2298 = vshrl.u32 %v2297, 7
        %v2299 = vsub.s32 %v2296, %v2298
        %v2300 = vrot.slane %v2249, %v2299
        %v2301 = vadd.s32 %v2296, 4294967288
        %v2302 = vlaneseq
        %v2303 = vshrl.u32 %v2302, 7
        %v2304 = vsub.s32 %v2301, %v2303
        %v2305 = vrot.slane %v2252, %v2304
        %vm2306 = vcmask 130112
        %v2307 = vsel %vm2306, %v2305, %v2300
        %v2308 = vadd.s32 %v2296, 4294967280
        %v2309 = vlaneseq
        %v2310 = vshrl.u32 %v2309, 7
        %v2311 = vsub.s32 %v2308, %v2310
        %v2312 = vrot.slane %v2255, %v2311
        %vm2313 = vcmask 195712
        %v2314 = vsel %vm2313, %v2312, %v2307
        %v2315 = vadd.s32 %v2296, 4294967272
        %v2316 = vlaneseq
        %v2317 = vshrl.u32 %v2316, 7
        %v2318 = vsub.s32 %v2315, %v2317
        %v2319 = vrot.slane %v2258, %v2318
        %vm2320 = vcmask 261312
        %v2321 = vsel %vm2320, %v2319, %v2314
        %v2322 = vadd.s32 %v2296, 4294967264
        %v2323 = vlaneseq
        %v2324 = vshrl.u32 %v2323, 7
        %v2325 = vsub.s32 %v2322, %v2324
        %v2326 = vrot.slane %v2261, %v2325
        %vm2327 = vcmask 326912
        %v2328 = vsel %vm2327, %v2326, %v2321
        %v2329 = vadd.s32 %v2296, 4294967256
        %v2330 = vlaneseq
        %v2331 = vshrl.u32 %v2330, 7
        %v2332 = vsub.s32 %v2329, %v2331
        %v2333 = vrot.slane %v2264, %v2332
        %vm2334 = vcmask 392512
        %v2335 = vsel %vm2334, %v2333, %v2328
        %v2336 = vadd.s32 %v2296, 4294967248
        %v2337 = vlaneseq
        %v2338 = vshrl.u32 %v2337, 7
        %v2339 = vsub.s32 %v2336, %v2338
        %v2340 = vrot.slane %v2267, %v2339
        %vm2341 = vcmask 458112
        %v2342 = vsel %vm2341, %v2340, %v2335
        %v2343 = vadd.s32 %v2296, 4294967240
        %v2344 = vlaneseq
        %v2345 = vshrl.u32 %v2344, 7
        %v2346 = vsub.s32 %v2343, %v2345
        %v2347 = vrot.slane %v2270, %v2346
        %vm2348 = vcmask 523712
        %v2349 = vsel %vm2348, %v2347, %v2342
        %v2350 = vadd.s32 %v2296, 4294967232
        %v2351 = vlaneseq
        %v2352 = vshrl.u32 %v2351, 7
        %v2353 = vsub.s32 %v2350, %v2352
        %v2354 = vrot.slane %v2273, %v2353
        %vm2355 = vcmask 589312
        %v2356 = vsel %vm2355, %v2354, %v2349
        %v2357 = vadd.s32 %v2296, 4294967224
        %v2358 = vlaneseq
        %v2359 = vshrl.u32 %v2358, 7
        %v2360 = vsub.s32 %v2357, %v2359
        %v2361 = vrot.slane %v2276, %v2360
        %vm2362 = vcmask 654912
        %v2363 = vsel %vm2362, %v2361, %v2356
        %v2364 = vadd.s32 %v2296, 4294967216
        %v2365 = vlaneseq
        %v2366 = vshrl.u32 %v2365, 7
        %v2367 = vsub.s32 %v2364, %v2366
        %v2368 = vrot.slane %v2279, %v2367
        %vm2369 = vcmask 720512
        %v2370 = vsel %vm2369, %v2368, %v2363
        %v2371 = vadd.s32 %v2296, 4294967208
        %v2372 = vlaneseq
        %v2373 = vshrl.u32 %v2372, 7
        %v2374 = vsub.s32 %v2371, %v2373
        %v2375 = vrot.slane %v2282, %v2374
        %vm2376 = vcmask 786112
        %v2377 = vsel %vm2376, %v2375, %v2370
        %v2378 = vadd.s32 %v2296, 4294967200
        %v2379 = vlaneseq
        %v2380 = vshrl.u32 %v2379, 7
        %v2381 = vsub.s32 %v2378, %v2380
        %v2382 = vrot.slane %v2285, %v2381
        %vm2383 = vcmask 851712
        %v2384 = vsel %vm2383, %v2382, %v2377
        %v2385 = vadd.s32 %v2296, 4294967192
        %v2386 = vlaneseq
        %v2387 = vshrl.u32 %v2386, 7
        %v2388 = vsub.s32 %v2385, %v2387
        %v2389 = vrot.slane %v2288, %v2388
        %vm2390 = vcmask 917312
        %v2391 = vsel %vm2390, %v2389, %v2384
        %v2392 = vadd.s32 %v2296, 4294967184
        %v2393 = vlaneseq
        %v2394 = vshrl.u32 %v2393, 7
        %v2395 = vsub.s32 %v2392, %v2394
        %v2396 = vrot.slane %v2291, %v2395
        %vm2397 = vcmask 982912
        %v2398 = vsel %vm2397, %v2396, %v2391
        %v2399 = vadd.s32 %v2296, 4294967176
        %v2400 = vlaneseq
        %v2401 = vshrl.u32 %v2400, 7
        %v2402 = vsub.s32 %v2399, %v2401
        %v2403 = vrot.slane %v2294, %v2402
        %vm2404 = vcmask 1048512
        %v2405 = vsel %vm2404, %v2403, %v2398
        %v2407 = vunpack.c.l.s4 1966171168
        %v2408 = vunpack.c.0.s8 %v2407
        %v2409 = vlaneseq
        %v2410 = vshrl.u32 %v2409, 7
        %v2411 = vsub.s32 %v2408, %v2410
        %v2412 = vrot.slane %v2405, %v2411
        %v2414 = vunpack.c.l.s4 1966171168
        %v2415 = vunpack.c.0.s8 %v2414
        %v2416 = vlaneseq
        %v2417 = vshrl.u32 %v2416, 7
        %v2418 = vsub.s32 %v2415, %v2417
        %v2419 = vrot.slane %v2412, %v2418
        %v2421 = vsel %vm934, -inf, %v2419
        %vm2422 = vcmask 1040384
        %v2423 = vsel %vm2422, %v2421, -inf
        %2424 = vmax.xlane.f32.xlu0 %v2423
        %v2425 = vpop.xlane.xlu0 %2424
        %v2426 = vsub.f32 %v2421, %v2425
        %v2427 = vmul.f32 %v2426, 1.442695
        %v2428 = vpow.pop %v2427
        %v2429 = vsel %vm2422, %v2428, 0.0
        %2430 = vadd.xlane.f32.xlu0 %v2429
        %v2431 = vpop.xlane.xlu0 %2430
        %v2432 = vrcp.pop %v2431
        %v2433 = vmul.f32 %v2428, %v2432
        %2434 = vmatprep.subr.mxu0 0.0
        %2435 = vmatpush1.msra.mxu0 %v569
        %2436 = vmatprep.subr.mxu0 0.0
        %2437 = vmatpush1.msra.mxu0 %v572
        %2438 = vmatprep.subr.mxu0 0.0
        %2439 = vmatpush1.msra.mxu0 %v577
        %2440 = vmatprep.subr.mxu0 0.0
        %2441 = vmatpush1.msra.mxu0 %v580
        %2442 = vmatprep.subr.mxu0 0.0
        %2443 = vmatpush1.msra.mxu0 %v585
        %2444 = vmatprep.subr.mxu0 0.0
        %2445 = vmatpush1.msra.mxu0 %v588
        %2446 = vmatprep.subr.mxu0 0.0
        %2447 = vmatpush1.msra.mxu0 %v593
        %2448 = vmatprep.subr.mxu0 0.0
        %2449 = vmatpush1.msra.mxu0 %v596
        %2450 = vmatprep.subr.mxu0 0.0
        %2451 = vmatpush1.msra.mxu0 %v601
        %2452 = vmatprep.subr.mxu0 0.0
        %2453 = vmatpush1.msra.mxu0 %v604
        %2454 = vmatprep.subr.mxu0 0.0
        %2455 = vmatpush1.msra.mxu0 %v609
        %2456 = vmatprep.subr.mxu0 0.0
        %2457 = vmatpush1.msra.mxu0 %v612
        %2458 = vmatprep.subr.mxu0 0.0
        %2459 = vmatpush1.msra.mxu0 %v617
        %2460 = vmatprep.subr.mxu0 0.0
        %2461 = vmatpush1.msra.mxu0 %v620
        %2462 = vmatprep.subr.mxu0 0.0
        %2463 = vmatpush1.msra.mxu0 %v625
        %2464 = vmatprep.subr.mxu0 0.0
        %2465 = vmatpush1.msra.mxu0 %v628
        %2466 = vmatprep.subr.mxu0 0.0
        %2467 = vmatpush1.msra.mxu0 0.0
        %2468 = vmatprep.subr.mxu0 0.0
        %2469 = vmatpush1.msra.mxu0 0.0
        %2470 = vmatprep.subr.mxu0 0.0
        %2471 = vmatpush1.msra.mxu0 0.0
        %2472 = vmatprep.subr.mxu0 0.0
        %2473 = vmatpush1.msra.mxu0 0.0
        %2474 = vmatprep.subr.mxu0 0.0
        %2475 = vmatpush1.msra.mxu0 0.0
        %2476 = vmatprep.subr.mxu0 0.0
        %2477 = vmatpush1.msra.mxu0 0.0
        %2478 = vmatprep.subr.mxu0 0.0
        %2479 = vmatpush1.msra.mxu0 0.0
        %2480 = vmatprep.subr.mxu0 0.0
        %2481 = vmatpush1.msra.mxu0 0.0
        %2482 = vmatprep.subr.mxu0 0.0
        %2483 = vmatpush1.msra.mxu0 0.0
        %2484 = vmatprep.subr.mxu0 0.0
        %2485 = vmatpush1.msra.mxu0 0.0
        %2486 = vmatprep.subr.mxu0 0.0
        %2487 = vmatpush1.msra.mxu0 0.0
        %2488 = vmatprep.subr.mxu0 0.0
        %2489 = vmatpush1.msra.mxu0 0.0
        %2490 = vmatprep.subr.mxu0 0.0
        %2491 = vmatpush1.msra.mxu0 0.0
        %2492 = vmatprep.subr.mxu0 0.0
        %2493 = vmatpush1.msra.mxu0 0.0
        %2494 = vmatprep.subr.mxu0 0.0
        %2495 = vmatpush1.msra.mxu0 0.0
        %2496 = vmatprep.subr.mxu0 0.0
        %2497 = vmatpush1.msra.mxu0 0.0
        %2498 = vmatprep.mubr.f32.mxu0 0.0
        %2499 = vmatmul.mubr.f32.gmra.mrb[0].mxu0 %v2433
        %v2500 = vpop.f32.mrb[0].mxu0
        %v2501 = vadd.f32 0.0, %v2500
        %v2502 = vpop.f32.mrb[0].mxu0
        %2503 = vdwg.mxu0
        %2504 = vst [vmem:[%s378] sm:$0x1] %v2501
        %2505 = vst [vmem:[%s384] sm:$0x1] %v2433
        %s2506 = sand.u32 %s241, 1
        %s2507 = scalar_lea.sflag [#allocation4], %s2506
        %s2508 = sand.u32 %s241, 1
        %s2509 = scalar_lea.vmem [#allocation3], %s2508
        %s2510 = sand.u32 %s267, 1
        %s2511 = scalar_lea.sflag [#allocation6], %s2510
        %s2512 = sand.u32 %s267, 1
        %s2513 = scalar_lea.vmem [#allocation5], %s2512
        // Predicated region
        $region57: #{attention_forward.1} parent=55 // pred_check
          %p2514 = pneg %p251
        $region58: #{attention_forward.1} parent=55 // pred_check_branch
          %2516 = sbr.rel (%p2514) target = $region60
        $region59: #{attention_forward.1} parent=55 // pred_region
          %s2518 = ssub.s32 16, 16
          %2519 = vsyncadd %s2507, %s2518
          %s2520 = smul.addr %s29, 16
          %s2521 = scalar_lea.hbm %s9, %s2520
          %s2523 = sshll.u32 %s2509, 4
          %s2524 = int_to_ptr.vmem [resolvable:$true] %s2523
          %2526 = dma.vmem_to_hbm [thread:$0]  %s2524, 16, %s2521, %s2507
        $region60: #{attention_forward.1} parent=55 // pred_fallthru
          _
        // Predicated region
        $region61: #{attention_forward.1} parent=55 // pred_check
          %p2527 = pneg %p277
        $region62: #{attention_forward.1} parent=55 // pred_check_branch
          %2529 = sbr.rel (%p2527) target = $region64
        $region63: #{attention_forward.1} parent=55 // pred_region
          %s2531 = ssub.s32 16, 16
          %2532 = vsyncadd %s2511, %s2531
          %s2533 = smul.addr %s29, 16
          %s2534 = scalar_lea.hbm %s10, %s2533
          %s2536 = sshll.u32 %s2513, 4
          %s2537 = int_to_ptr.vmem [resolvable:$true] %s2536
          %2539 = dma.vmem_to_hbm [thread:$0]  %s2537, 16, %s2534, %s2511
        $region64: #{attention_forward.1} parent=55 // pred_fallthru
          _
      $region56: #{attention_forward.1} parent=5 // pred_fallthru
        _
      %p2540 = scmp.le.s32.totalorder 2, %s24
      // Predicated region
      $region65: #{attention_forward.1} parent=5 // pred_check
        %p2541 = pneg %p2540
      $region66: #{attention_forward.1} parent=5 // pred_check_branch
        %2543 = sbr.rel (%p2541) target = $region68
      $region67: #{attention_forward.1} parent=5 // pred_region
        %s2544 = ssub.s32 %s24, 2
        // Predicated region
        $region69: #{attention_forward.1} parent=67 // pred_check
          %p2545 = pneg %p257
        $region70: #{attention_forward.1} parent=67 // pred_check_branch
          %2547 = sbr.rel (%p2545) target = $region72
        $region71: #{attention_forward.1} parent=67 // pred_region
          %s2548 = sand.u32 %s242, 1
          %s2549 = scalar_lea.sflag [#allocation4], %s2548
          %s2550 = sand.u32 %s242, 1
          %s2551 = scalar_lea.vmem [#allocation3], %s2550
          %2552 = dma.done %s2549, 16
        $region72: #{attention_forward.1} parent=67 // pred_fallthru
          _
        // Predicated region
        $region73: #{attention_forward.1} parent=67 // pred_check
          %p2553 = pneg %p283
        $region74: #{attention_forward.1} parent=67 // pred_check_branch
          %2555 = sbr.rel (%p2553) target = $region76
        $region75: #{attention_forward.1} parent=67 // pred_region
          %s2556 = sand.u32 %s268, 1
          %s2557 = scalar_lea.sflag [#allocation6], %s2556
          %s2558 = sand.u32 %s268, 1
          %s2559 = scalar_lea.vmem [#allocation5], %s2558
          %2560 = dma.done %s2557, 16
        $region76: #{attention_forward.1} parent=67 // pred_fallthru
          _
      $region68: #{attention_forward.1} parent=5 // pred_fallthru
        _
    $region6: #{attention_forward.1} parent=1 // loop_footer
      %s28 = sadd.s32 1, %s24
    $region7: #{attention_forward.1} parent=1 // loop_footer_branch
      %23 = sbr.rel target = $region3
    $region8: #{attention_forward.1} parent=1 // loop_exit
      _
    %2561 = vsyncpa [#allocation4], 1
    %s2562 = scalar_lea.sflag [#allocation4], 1
    %2563 = vsyncpa %s2562, 1
    %2564 = vsyncpa [#allocation6], 1
    %s2565 = scalar_lea.sflag [#allocation6], 1
    %2566 = vsyncpa %s2565, 1

</llo_original>
